<compile_context>
chip_gen: v7x
topology: tpu7x:2x2x1
jax: 0.10.0
libtpu: 0.0.40
codegen_flags: <defaults>
</compile_context>

<pallas_src>
import jax
import jax.numpy as jnp
from jax.experimental import pallas as pl
from jax.experimental.pallas import tpu as pltpu


def _round_up(n, m):
    return pl.cdiv(n, m) * m


def _sublane_multiple(dtype):
    # f32 -> 8, bf16 -> 16, fp8/int8 -> 32
    return max(8, 32 // jnp.dtype(dtype).itemsize)


# ---------------------------------------------------------------------------
# Kernel bodies
# ---------------------------------------------------------------------------

def _nnsolver_fwd_fused_kernel(x_ref, w1_ref, b1_ref, w2_ref, b2_ref, o_ref,
                               h_ref):
    # x_ref : (V, TN, D_IN)      streamed batch tile (original dtype)
    # w1_ref: (V, D_IN, H_p)     VMEM-resident, compute dtype
    # b1_ref: (V, 1, H_p)        f32
    # w2_ref: (V*H_p, D_OUT_p)   view-stacked along K, compute dtype
    # b2_ref: (1, D_OUT_p)       sum over views, f32
    # o_ref : (TN, D_OUT_p)
    # h_ref : (TN, V*H_p)        scratch: concatenated layer-1 activations
    V = x_ref.shape[0]
    Hp = w1_ref.shape[-1]
    for v in range(V):                       # V is small & static -> unrolled
        xv = x_ref[v].astype(w1_ref.dtype)   # per-tile cast in VMEM (no-op f32)
        h = jnp.dot(xv, w1_ref[v], preferred_element_type=jnp.float32)
        h = jnp.maximum(h + b1_ref[v], 0.0)  # bias + ReLU in f32
        h_ref[:, v * Hp:(v + 1) * Hp] = h.astype(h_ref.dtype)
    # Layer 2 + sum over views fused into one MXU matmul with K = V*H_p.
    y = jnp.dot(h_ref[...], w2_ref[...], preferred_element_type=jnp.float32)
    o_ref[...] = (y + b2_ref[...]).astype(o_ref.dtype)


def _nnsolver_fwd_accum_kernel(x_ref, w1_ref, b1_ref, w2_ref, b2_ref, o_ref,
                               acc_ref):
    # Same operands, but w2_ref is (V, H_p, D_OUT_p) and the view-sum is a
    # per-view f32 accumulation (no (TN, V*H_p) scratch round-trip).
    V = x_ref.shape[0]
    acc_ref[...] = jnp.zeros_like(acc_ref)
    for v in range(V):
        xv = x_ref[v].astype(w1_ref.dtype)
        h = jnp.dot(xv, w1_ref[v], preferred_element_type=jnp.float32)
        h = jnp.maximum(h + b1_ref[v], 0.0)
        acc_ref[...] += jnp.dot(h.astype(w2_ref.dtype), w2_ref[v],
                                preferred_element_type=jnp.float32)
    o_ref[...] = (acc_ref[...] + b2_ref[...]).astype(o_ref.dtype)


# ---------------------------------------------------------------------------
# Parameter preparation (model setup time, NOT per forward call)
# ---------------------------------------------------------------------------

def nnsolver_prepare_params(w1, b1, w2, b2, *, compute_dtype=jnp.float32):
    """Pad / stack / cast the per-view MLP weights once.

    Layouts (already "transposed" vs torch Linear so that y = x @ w + b):
      w1: (V, D_IN, H)   b1: (V, 1, H)   w2: (V, H, D_OUT)   b2: (V, 1, D_OUT)

    compute_dtype: jnp.float32 (exact), jnp.bfloat16 (recommended on
    v5e/v6e/v7x: native MXU operands, f32 accumulation kept) or
    jnp.float8_e4m3fn (v7x only; gate on accuracy).
    """
    V, D_IN, H = w1.shape
    D_OUT = w2.shape[-1]
    h_p = _round_up(H, 128)
    d_out_p = _round_up(D_OUT, 128)
    cdt = jnp.dtype(compute_dtype)
    f32 = jnp.float32
    w1p = jnp.zeros((V, D_IN, h_p), cdt).at[:, :, :H].set(w1.astype(cdt))
    b1p = jnp.zeros((V, 1, h_p), f32).at[:, :, :H].set(b1.astype(f32))
    w2p = jnp.zeros((V, h_p, d_out_p), cdt).at[:, :H, :D_OUT].set(
        w2.astype(cdt))
    b2s = jnp.zeros((1, d_out_p), f32).at[:, :D_OUT].set(
        jnp.sum(b2.astype(f32), axis=0))
    return {"w1p": w1p, "b1p": b1p, "w2p": w2p, "b2s": b2s,
            "dims": (V, D_IN, H, D_OUT)}


# ---------------------------------------------------------------------------
# Forward
# ---------------------------------------------------------------------------

def nnsolver_forward(x, params, *, block_n=512, out_dtype=jnp.float32):
    """Pallas implementation of NNSolver.forward / _reconstruction.

    x: (V, N, D_IN) in its original dtype (kept unpadded / uncast in HBM).
    params: output of nnsolver_prepare_params (weights already padded/cast).
    """
    w1p, b1p, w2p, b2s = params["w1p"], params["b1p"], params["w2p"], params["b2s"]
    V, D_IN, _H, D_OUT = params["dims"]
    assert x.shape[0] == V and x.shape[-1] == D_IN, "x does not match params"
    N = x.shape[1]
    h_p = w1p.shape[-1]
    d_out_p = w2p.shape[-1]
    cdt = w1p.dtype

    # Batch tile: respect sublane packing of every dtype involved, keep at
    # least ~4 grid steps when N allows it (pipelining + both v7x cores).
    mult = max(_sublane_multiple(x.dtype), _sublane_multiple(cdt),
               _sublane_multiple(out_dtype))
    tn = min(_round_up(int(block_n), mult), _round_up(pl.cdiv(N, 4), mult))
    tn = max(tn, mult)
    grid_n = pl.cdiv(N, tn)

    fuse_layer2 = d_out_p >= h_p
    if fuse_layer2:
        kernel = _nnsolver_fwd_fused_kernel
        w2_in = w2p.reshape(V * h_p, d_out_p)    # contiguous -> free reshape
        scratch = [pltpu.VMEM((tn, V * h_p), cdt)]
        scratch_bytes = tn * V * h_p * jnp.dtype(cdt).itemsize
    else:
        kernel = _nnsolver_fwd_accum_kernel
        w2_in = w2p
        scratch = [pltpu.VMEM((tn, d_out_p), jnp.float32)]
        scratch_bytes = tn * d_out_p * 4

    # Real VMEM budget: 2x streamed x tile + single-buffered weights + scratch
    # + 2x output tile, +30% slack.  Floor 16 MiB, cap 64 MiB (valid on v7x).
    w_bytes = sum(int(a.size) * a.dtype.itemsize for a in (w1p, b1p, w2p, b2s))
    budget = (2 * V * tn * D_IN * x.dtype.itemsize
              + w_bytes + scratch_bytes
              + 2 * tn * d_out_p * jnp.dtype(out_dtype).itemsize)
    vmem_limit = int(budget * 1.3) + (2 << 20)
    vmem_limit = max(16 << 20, min(vmem_limit, 64 << 20))

    flops = int(2 * V * N * D_IN * h_p + 2 * N * V * h_p * d_out_p)
    bytes_accessed = int(x.size * x.dtype.itemsize + w_bytes
                         + N * d_out_p * jnp.dtype(out_dtype).itemsize)

    def _spec(shape, index_map, mode):
        if mode is None:
            return pl.BlockSpec(shape, index_map)
        return pl.BlockSpec(shape, index_map, pipeline_mode=mode)

    def _run(weight_mode):
        if fuse_layer2:
            w2_spec = _spec((V * h_p, d_out_p), lambda n: (0, 0), weight_mode)
        else:
            w2_spec = _spec((V, h_p, d_out_p), lambda n: (0, 0, 0), weight_mode)
        grid_spec = pltpu.PrefetchScalarGridSpec(
            num_scalar_prefetch=0,
            grid=(grid_n,),
            in_specs=[
                # x tile: streams / double-buffers across grid steps.
                pl.BlockSpec((V, tn, D_IN), lambda n: (0, n, 0)),
                # Weights & biases: constant index_map -> DMAed once,
                # VMEM-resident; single-buffered when weight_mode=Buffered(1).
                _spec((V, D_IN, h_p), lambda n: (0, 0, 0), weight_mode),
                _spec((V, 1, h_p), lambda n: (0, 0, 0), weight_mode),
                w2_spec,
                _spec((1, d_out_p), lambda n: (0, 0), weight_mode),
            ],
            out_specs=pl.BlockSpec((tn, d_out_p), lambda n: (n, 0)),
            scratch_shapes=scratch,
        )
        return pl.pallas_call(
            kernel,
            out_shape=jax.ShapeDtypeStruct((N, d_out_p), out_dtype),
            grid_spec=grid_spec,
            compiler_params=pltpu.CompilerParams(
                dimension_semantics=("parallel",),   # batch tiles independent
                vmem_limit_bytes=vmem_limit,
            ),
            cost_estimate=pl.CostEstimate(
                flops=flops, transcendentals=0, bytes_accessed=bytes_accessed),
        )(x, w1p, b1p, w2_in, b2s)

    try:
        out_p = _run(pl.Buffered(1))     # single-buffer the resident weights
    except Exception:
        # Fallback for environments that reject Buffered(1): weights fall back
        # to the default double-buffering (2x footprint) but the kernel runs.
        out_p = _run(None)

    return out_p[:, :D_OUT] if d_out_p != D_OUT else out_p


def nnsolver_forward_ref(x, w1, b1, w2, b2):
    """Pure-JAX reference (mirrors torch.stack(...).sum(0) of per-view MLPs)."""
    h = jnp.maximum(jnp.einsum("vnd,vdh->vnh", x, w1) + b1, 0.0)
    y = jnp.einsum("vnh,vho->vno", h, w2) + b2
    return jnp.sum(y, axis=0)


# TODO(synk): the Adam training loop, MSE/group-norm/global-norm loss terms and
# compute_projections/predict are host-side training utilities, not part of
# the forward pass; only the forward reconstruction is implemented as a kernel.

if __name__ == "__main__":
    key = jax.random.PRNGKey(0)

    def make_problem(V, N, D_IN, H, D_OUT, k):
        ks = jax.random.split(k, 5)
        x = jax.random.normal(ks[0], (V, N, D_IN), dtype=jnp.float32)
        w1 = 0.1 * jax.random.normal(ks[1], (V, D_IN, H), dtype=jnp.float32)
        b1 = 0.1 * jax.random.normal(ks[2], (V, 1, H), dtype=jnp.float32)
        w2 = 0.1 * jax.random.normal(ks[3], (V, H, D_OUT), dtype=jnp.float32)
        b2 = 0.1 * jax.random.normal(ks[4], (V, 1, D_OUT), dtype=jnp.float32)
        return x, w1, b1, w2, b2

    k1, k2 = jax.random.split(key)

    # --- Config A: D_OUT_p >= H_p -> fused layer-2 (single K=V*H_p matmul).
    # N=50 exercises the partial last batch block (no batch padding in HBM).
    x, w1, b1, w2, b2 = make_problem(3, 50, 16, 32, 16, k1)
    ref = nnsolver_forward_ref(x, w1, b1, w2, b2)

    params_f32 = nnsolver_prepare_params(w1, b1, w2, b2)       # setup-time
    out = nnsolver_forward(x, params_f32)
    jax.block_until_ready(out)
    assert out.shape == ref.shape
    assert jnp.allclose(out, ref, atol=1e-4, rtol=1e-4), "f32 mismatch vs ref"

    # bf16 operands (recommended on v5e/v6e/v7x), f32 accumulation.
    params_bf16 = nnsolver_prepare_params(w1, b1, w2, b2,
                                          compute_dtype=jnp.bfloat16)
    out_bf16 = nnsolver_forward(x, params_bf16)
    jax.block_until_ready(out_bf16)
    assert jnp.allclose(out_bf16, ref, atol=5e-2, rtol=5e-2), "bf16 mismatch"

    # --- Config B: H_p > D_OUT_p -> per-view accumulation kernel (no h-scratch
    # round-trip; fewer store-slot bytes, smaller VMEM scratch).
    x2, w1b, b1b, w2b, b2b = make_problem(2, 24, 24, 160, 10, k2)
    ref2 = nnsolver_forward_ref(x2, w1b, b1b, w2b, b2b)
    params2 = nnsolver_prepare_params(w1b, b1b, w2b, b2b)
    out2 = nnsolver_forward(x2, params2)
    jax.block_until_ready(out2)
    assert out2.shape == ref2.shape
    assert jnp.allclose(out2, ref2, atol=1e-4, rtol=1e-4), "accum-path mismatch"

    print("KERNEL_OK")
</pallas_src>

<mosaic_0001>
module attributes {stable_mosaic.version = 11 : i64} {
  func.func @_nnsolver_fwd_fused_kernel(%arg0: i32, %arg1: memref<3x16x16xf32, #tpu.memory_space<vmem>>, %arg2: memref<3x16x128xf32, #tpu.memory_space<vmem>>, %arg3: memref<3x1x128xf32, #tpu.memory_space<vmem>>, %arg4: memref<384x128xf32, #tpu.memory_space<vmem>>, %arg5: memref<1x128xf32, #tpu.memory_space<vmem>>, %arg6: memref<16x128xf32, #tpu.memory_space<vmem>>, %arg7: memref<16x384xf32, #tpu.memory_space<vmem>>) attributes {dimension_semantics = [#tpu.dimension_semantics<parallel>], iteration_bounds = array<i64: 4>, scalar_prefetch = 0 : i64, scratch_operands = 1 : i64, tpu.core_type = #tpu.core_type<tc>, window_params = [{transform_indices = @transform_0, window_bounds = array<i64: 3, 16, 16>}, {pipeline_mode = #tpu.pipeline_mode<synchronous>, transform_indices = @transform_1, window_bounds = array<i64: 3, 16, 128>}, {pipeline_mode = #tpu.pipeline_mode<synchronous>, transform_indices = @transform_2, window_bounds = array<i64: 3, 1, 128>}, {pipeline_mode = #tpu.pipeline_mode<synchronous>, transform_indices = @transform_3, window_bounds = array<i64: 384, 128>}, {pipeline_mode = #tpu.pipeline_mode<synchronous>, transform_indices = @transform_4, window_bounds = array<i64: 1, 128>}, {transform_indices = @transform_5, window_bounds = array<i64: 16, 128>}]} {
    %c0 = arith.constant 0 : index
    %c0_0 = arith.constant 0 : index
    %c0_1 = arith.constant 0 : index
    %0 = vector.load %arg1[%c0, %c0_0, %c0_1] : memref<3x16x16xf32, #tpu.memory_space<vmem>>, vector<1x16x16xf32>
    %1 = vector.shape_cast %0 : vector<1x16x16xf32> to vector<16x16xf32>
    %c0_2 = arith.constant 0 : index
    %c0_3 = arith.constant 0 : index
    %c0_4 = arith.constant 0 : index
    %2 = vector.load %arg2[%c0_2, %c0_3, %c0_4] : memref<3x16x128xf32, #tpu.memory_space<vmem>>, vector<1x16x128xf32>
    %3 = vector.shape_cast %2 : vector<1x16x128xf32> to vector<16x128xf32>
    %cst = arith.constant dense<0.000000e+00> : vector<16x128xf32>
    %4 = tpu.matmul %1, %3, %cst {dimension_numbers = #tpu.dot_dimension_numbers<[1], [0], [0], [1], [0, 0, 1, 1], [], []>} : vector<16x16xf32>, vector<16x128xf32>, vector<16x128xf32> -> vector<16x128xf32>
    %c0_5 = arith.constant 0 : index
    %c0_6 = arith.constant 0 : index
    %c0_7 = arith.constant 0 : index
    %5 = vector.load %arg3[%c0_5, %c0_6, %c0_7] : memref<3x1x128xf32, #tpu.memory_space<vmem>>, vector<1x1x128xf32>
    %6 = vector.shape_cast %5 : vector<1x1x128xf32> to vector<1x128xf32>
    %7 = vector.broadcast %6 : vector<1x128xf32> to vector<16x128xf32>
    %8 = arith.addf %4, %7 : vector<16x128xf32>
    %cst_8 = arith.constant 0.000000e+00 : f32
    %9 = vector.broadcast %cst_8 : f32 to vector<16x128xf32>
    %10 = arith.maximumf %8, %9 : vector<16x128xf32>
    %c0_9 = arith.constant 0 : index
    %c0_10 = arith.constant 0 : index
    %11 = vector.load %arg7[%c0_9, %c0_10] : memref<16x384xf32, #tpu.memory_space<vmem>>, vector<16x128xf32>
    tpu.vector_store %arg7[%c0_9, %c0_10], %10 {strides = array<i32>} : memref<16x384xf32, #tpu.memory_space<vmem>>, vector<16x128xf32>,
    %c1 = arith.constant 1 : index
    %c0_11 = arith.constant 0 : index
    %c0_12 = arith.constant 0 : index
    %12 = vector.load %arg1[%c1, %c0_11, %c0_12] : memref<3x16x16xf32, #tpu.memory_space<vmem>>, vector<1x16x16xf32>
    %13 = vector.shape_cast %12 : vector<1x16x16xf32> to vector<16x16xf32>
    %c1_13 = arith.constant 1 : index
    %c0_14 = arith.constant 0 : index
    %c0_15 = arith.constant 0 : index
    %14 = vector.load %arg2[%c1_13, %c0_14, %c0_15] : memref<3x16x128xf32, #tpu.memory_space<vmem>>, vector<1x16x128xf32>
    %15 = vector.shape_cast %14 : vector<1x16x128xf32> to vector<16x128xf32>
    %cst_16 = arith.constant dense<0.000000e+00> : vector<16x128xf32>
    %16 = tpu.matmul %13, %15, %cst_16 {dimension_numbers = #tpu.dot_dimension_numbers<[1], [0], [0], [1], [0, 0, 1, 1], [], []>} : vector<16x16xf32>, vector<16x128xf32>, vector<16x128xf32> -> vector<16x128xf32>
    %c1_17 = arith.constant 1 : index
    %c0_18 = arith.constant 0 : index
    %c0_19 = arith.constant 0 : index
    %17 = vector.load %arg3[%c1_17, %c0_18, %c0_19] : memref<3x1x128xf32, #tpu.memory_space<vmem>>, vector<1x1x128xf32>
    %18 = vector.shape_cast %17 : vector<1x1x128xf32> to vector<1x128xf32>
    %19 = vector.broadcast %18 : vector<1x128xf32> to vector<16x128xf32>
    %20 = arith.addf %16, %19 : vector<16x128xf32>
    %cst_20 = arith.constant 0.000000e+00 : f32
    %21 = vector.broadcast %cst_20 : f32 to vector<16x128xf32>
    %22 = arith.maximumf %20, %21 : vector<16x128xf32>
    %c0_21 = arith.constant 0 : index
    %c128 = arith.constant 128 : index
    %23 = vector.load %arg7[%c0_21, %c128] : memref<16x384xf32, #tpu.memory_space<vmem>>, vector<16x128xf32>
    tpu.vector_store %arg7[%c0_21, %c128], %22 {strides = array<i32>} : memref<16x384xf32, #tpu.memory_space<vmem>>, vector<16x128xf32>,
    %c2 = arith.constant 2 : index
    %c0_22 = arith.constant 0 : index
    %c0_23 = arith.constant 0 : index
    %24 = vector.load %arg1[%c2, %c0_22, %c0_23] : memref<3x16x16xf32, #tpu.memory_space<vmem>>, vector<1x16x16xf32>
    %25 = vector.shape_cast %24 : vector<1x16x16xf32> to vector<16x16xf32>
    %c2_24 = arith.constant 2 : index
    %c0_25 = arith.constant 0 : index
    %c0_26 = arith.constant 0 : index
    %26 = vector.load %arg2[%c2_24, %c0_25, %c0_26] : memref<3x16x128xf32, #tpu.memory_space<vmem>>, vector<1x16x128xf32>
    %27 = vector.shape_cast %26 : vector<1x16x128xf32> to vector<16x128xf32>
    %cst_27 = arith.constant dense<0.000000e+00> : vector<16x128xf32>
    %28 = tpu.matmul %25, %27, %cst_27 {dimension_numbers = #tpu.dot_dimension_numbers<[1], [0], [0], [1], [0, 0, 1, 1], [], []>} : vector<16x16xf32>, vector<16x128xf32>, vector<16x128xf32> -> vector<16x128xf32>
    %c2_28 = arith.constant 2 : index
    %c0_29 = arith.constant 0 : index
    %c0_30 = arith.constant 0 : index
    %29 = vector.load %arg3[%c2_28, %c0_29, %c0_30] : memref<3x1x128xf32, #tpu.memory_space<vmem>>, vector<1x1x128xf32>
    %30 = vector.shape_cast %29 : vector<1x1x128xf32> to vector<1x128xf32>
    %31 = vector.broadcast %30 : vector<1x128xf32> to vector<16x128xf32>
    %32 = arith.addf %28, %31 : vector<16x128xf32>
    %cst_31 = arith.constant 0.000000e+00 : f32
    %33 = vector.broadcast %cst_31 : f32 to vector<16x128xf32>
    %34 = arith.maximumf %32, %33 : vector<16x128xf32>
    %c0_32 = arith.constant 0 : index
    %c256 = arith.constant 256 : index
    %35 = vector.load %arg7[%c0_32, %c256] : memref<16x384xf32, #tpu.memory_space<vmem>>, vector<16x128xf32>
    tpu.vector_store %arg7[%c0_32, %c256], %34 {strides = array<i32>} : memref<16x384xf32, #tpu.memory_space<vmem>>, vector<16x128xf32>,
    %c0_33 = arith.constant 0 : index
    %c0_34 = arith.constant 0 : index
    %36 = vector.load %arg7[%c0_33, %c0_34] : memref<16x384xf32, #tpu.memory_space<vmem>>, vector<16x384xf32>
    %c0_35 = arith.constant 0 : index
    %c0_36 = arith.constant 0 : index
    %37 = vector.load %arg4[%c0_35, %c0_36] : memref<384x128xf32, #tpu.memory_space<vmem>>, vector<384x128xf32>
    %cst_37 = arith.constant dense<0.000000e+00> : vector<16x128xf32>
    %38 = tpu.matmul %36, %37, %cst_37 {dimension_numbers = #tpu.dot_dimension_numbers<[1], [0], [0], [1], [0, 0, 1, 1], [], []>} : vector<16x384xf32>, vector<384x128xf32>, vector<16x128xf32> -> vector<16x128xf32>
    %c0_38 = arith.constant 0 : index
    %c0_39 = arith.constant 0 : index
    %39 = vector.load %arg5[%c0_38, %c0_39] : memref<1x128xf32, #tpu.memory_space<vmem>>, vector<1x128xf32>
    %40 = vector.broadcast %39 : vector<1x128xf32> to vector<16x128xf32>
    %41 = arith.addf %38, %40 : vector<16x128xf32>
    %c0_40 = arith.constant 0 : index
    %c0_41 = arith.constant 0 : index
    %42 = vector.load %arg6[%c0_40, %c0_41] : memref<16x128xf32, #tpu.memory_space<vmem>>, vector<16x128xf32>
    tpu.vector_store %arg6[%c0_40, %c0_41], %41 {strides = array<i32>} : memref<16x128xf32, #tpu.memory_space<vmem>>, vector<16x128xf32>,
    return
  }
  func.func @transform_0(%arg0: i32) -> (i32, i32, i32) {
    %c0_i32 = arith.constant 0 : i32
    %c0_i32_0 = arith.constant 0 : i32
    %c0_i32_1 = arith.constant 0 : i32
    return %c0_i32, %arg0, %c0_i32_0 : i32, i32, i32
  }
  func.func @transform_1(%arg0: i32) -> (i32, i32, i32) {
    %c0_i32 = arith.constant 0 : i32
    %c0_i32_0 = arith.constant 0 : i32
    %c0_i32_1 = arith.constant 0 : i32
    %c0_i32_2 = arith.constant 0 : i32
    return %c0_i32, %c0_i32_0, %c0_i32_1 : i32, i32, i32
  }
  func.func @transform_2(%arg0: i32) -> (i32, i32, i32) {
    %c0_i32 = arith.constant 0 : i32
    %c0_i32_0 = arith.constant 0 : i32
    %c0_i32_1 = arith.constant 0 : i32
    %c0_i32_2 = arith.constant 0 : i32
    return %c0_i32, %c0_i32_0, %c0_i32_1 : i32, i32, i32
  }
  func.func @transform_3(%arg0: i32) -> (i32, i32) {
    %c0_i32 = arith.constant 0 : i32
    %c0_i32_0 = arith.constant 0 : i32
    %c0_i32_1 = arith.constant 0 : i32
    return %c0_i32, %c0_i32_0 : i32, i32
  }
  func.func @transform_4(%arg0: i32) -> (i32, i32) {
    %c0_i32 = arith.constant 0 : i32
    %c0_i32_0 = arith.constant 0 : i32
    %c0_i32_1 = arith.constant 0 : i32
    return %c0_i32, %c0_i32_0 : i32, i32
  }
  func.func @transform_5(%arg0: i32) -> (i32, i32) {
    %c0_i32 = arith.constant 0 : i32
    %c0_i32_0 = arith.constant 0 : i32
    return %arg0, %c0_i32 : i32, i32
  }
}

module attributes {stable_mosaic.version = 11 : i64} {
  func.func @_nnsolver_fwd_fused_kernel(%arg0: i32, %arg1: memref<3x16x16xf32, #tpu.memory_space<vmem>>, %arg2: memref<3x16x128xf32, #tpu.memory_space<vmem>>, %arg3: memref<3x1x128xf32, #tpu.memory_space<vmem>>, %arg4: memref<384x128xf32, #tpu.memory_space<vmem>>, %arg5: memref<1x128xf32, #tpu.memory_space<vmem>>, %arg6: memref<16x128xf32, #tpu.memory_space<vmem>>, %arg7: memref<16x384xf32, #tpu.memory_space<vmem>>) attributes {dimension_semantics = [#tpu.dimension_semantics<parallel>], iteration_bounds = array<i64: 4>, scalar_prefetch = 0 : i64, scratch_operands = 1 : i64, tpu.core_type = #tpu.core_type<tc>, window_params = [{transform_indices = @transform_0, window_bounds = array<i64: 3, 16, 16>}, {pipeline_mode = #tpu.pipeline_mode<synchronous>, transform_indices = @transform_1, window_bounds = array<i64: 3, 16, 128>}, {pipeline_mode = #tpu.pipeline_mode<synchronous>, transform_indices = @transform_2, window_bounds = array<i64: 3, 1, 128>}, {pipeline_mode = #tpu.pipeline_mode<synchronous>, transform_indices = @transform_3, window_bounds = array<i64: 384, 128>}, {pipeline_mode = #tpu.pipeline_mode<synchronous>, transform_indices = @transform_4, window_bounds = array<i64: 1, 128>}, {transform_indices = @transform_5, window_bounds = array<i64: 16, 128>}]} {
    %c0 = arith.constant 0 : index
    %c0_0 = arith.constant 0 : index
    %c0_1 = arith.constant 0 : index
    %0 = vector.load %arg1[%c0, %c0_0, %c0_1] : memref<3x16x16xf32, #tpu.memory_space<vmem>>, vector<1x16x16xf32>
    %1 = vector.shape_cast %0 : vector<1x16x16xf32> to vector<16x16xf32>
    %c0_2 = arith.constant 0 : index
    %c0_3 = arith.constant 0 : index
    %c0_4 = arith.constant 0 : index
    %2 = vector.load %arg2[%c0_2, %c0_3, %c0_4] : memref<3x16x128xf32, #tpu.memory_space<vmem>>, vector<1x16x128xf32>
    %3 = vector.shape_cast %2 : vector<1x16x128xf32> to vector<16x128xf32>
    %cst = arith.constant dense<0.000000e+00> : vector<16x128xf32>
    %4 = tpu.matmul %1, %3, %cst {dimension_numbers = #tpu.dot_dimension_numbers<[1], [0], [0], [1], [0, 0, 1, 1], [], []>} : vector<16x16xf32>, vector<16x128xf32>, vector<16x128xf32> -> vector<16x128xf32>
    %c0_5 = arith.constant 0 : index
    %c0_6 = arith.constant 0 : index
    %c0_7 = arith.constant 0 : index
    %5 = vector.load %arg3[%c0_5, %c0_6, %c0_7] : memref<3x1x128xf32, #tpu.memory_space<vmem>>, vector<1x1x128xf32>
    %6 = vector.shape_cast %5 : vector<1x1x128xf32> to vector<1x128xf32>
    %7 = vector.broadcast %6 : vector<1x128xf32> to vector<16x128xf32>
    %8 = arith.addf %4, %7 : vector<16x128xf32>
    %cst_8 = arith.constant 0.000000e+00 : f32
    %9 = vector.broadcast %cst_8 : f32 to vector<16x128xf32>
    %10 = arith.maximumf %8, %9 : vector<16x128xf32>
    %c0_9 = arith.constant 0 : index
    %c0_10 = arith.constant 0 : index
    %11 = vector.load %arg7[%c0_9, %c0_10] : memref<16x384xf32, #tpu.memory_space<vmem>>, vector<16x128xf32>
    tpu.vector_store %arg7[%c0_9, %c0_10], %10 {strides = array<i32>} : memref<16x384xf32, #tpu.memory_space<vmem>>, vector<16x128xf32>,
    %c1 = arith.constant 1 : index
    %c0_11 = arith.constant 0 : index
    %c0_12 = arith.constant 0 : index
    %12 = vector.load %arg1[%c1, %c0_11, %c0_12] : memref<3x16x16xf32, #tpu.memory_space<vmem>>, vector<1x16x16xf32>
    %13 = vector.shape_cast %12 : vector<1x16x16xf32> to vector<16x16xf32>
    %c1_13 = arith.constant 1 : index
    %c0_14 = arith.constant 0 : index
    %c0_15 = arith.constant 0 : index
    %14 = vector.load %arg2[%c1_13, %c0_14, %c0_15] : memref<3x16x128xf32, #tpu.memory_space<vmem>>, vector<1x16x128xf32>
    %15 = vector.shape_cast %14 : vector<1x16x128xf32> to vector<16x128xf32>
    %cst_16 = arith.constant dense<0.000000e+00> : vector<16x128xf32>
    %16 = tpu.matmul %13, %15, %cst_16 {dimension_numbers = #tpu.dot_dimension_numbers<[1], [0], [0], [1], [0, 0, 1, 1], [], []>} : vector<16x16xf32>, vector<16x128xf32>, vector<16x128xf32> -> vector<16x128xf32>
    %c1_17 = arith.constant 1 : index
    %c0_18 = arith.constant 0 : index
    %c0_19 = arith.constant 0 : index
    %17 = vector.load %arg3[%c1_17, %c0_18, %c0_19] : memref<3x1x128xf32, #tpu.memory_space<vmem>>, vector<1x1x128xf32>
    %18 = vector.shape_cast %17 : vector<1x1x128xf32> to vector<1x128xf32>
    %19 = vector.broadcast %18 : vector<1x128xf32> to vector<16x128xf32>
    %20 = arith.addf %16, %19 : vector<16x128xf32>
    %cst_20 = arith.constant 0.000000e+00 : f32
    %21 = vector.broadcast %cst_20 : f32 to vector<16x128xf32>
    %22 = arith.maximumf %20, %21 : vector<16x128xf32>
    %c0_21 = arith.constant 0 : index
    %c128 = arith.constant 128 : index
    %23 = vector.load %arg7[%c0_21, %c128] : memref<16x384xf32, #tpu.memory_space<vmem>>, vector<16x128xf32>
    tpu.vector_store %arg7[%c0_21, %c128], %22 {strides = array<i32>} : memref<16x384xf32, #tpu.memory_space<vmem>>, vector<16x128xf32>,
    %c2 = arith.constant 2 : index
    %c0_22 = arith.constant 0 : index
    %c0_23 = arith.constant 0 : index
    %24 = vector.load %arg1[%c2, %c0_22, %c0_23] : memref<3x16x16xf32, #tpu.memory_space<vmem>>, vector<1x16x16xf32>
    %25 = vector.shape_cast %24 : vector<1x16x16xf32> to vector<16x16xf32>
    %c2_24 = arith.constant 2 : index
    %c0_25 = arith.constant 0 : index
    %c0_26 = arith.constant 0 : index
    %26 = vector.load %arg2[%c2_24, %c0_25, %c0_26] : memref<3x16x128xf32, #tpu.memory_space<vmem>>, vector<1x16x128xf32>
    %27 = vector.shape_cast %26 : vector<1x16x128xf32> to vector<16x128xf32>
    %cst_27 = arith.constant dense<0.000000e+00> : vector<16x128xf32>
    %28 = tpu.matmul %25, %27, %cst_27 {dimension_numbers = #tpu.dot_dimension_numbers<[1], [0], [0], [1], [0, 0, 1, 1], [], []>} : vector<16x16xf32>, vector<16x128xf32>, vector<16x128xf32> -> vector<16x128xf32>
    %c2_28 = arith.constant 2 : index
    %c0_29 = arith.constant 0 : index
    %c0_30 = arith.constant 0 : index
    %29 = vector.load %arg3[%c2_28, %c0_29, %c0_30] : memref<3x1x128xf32, #tpu.memory_space<vmem>>, vector<1x1x128xf32>
    %30 = vector.shape_cast %29 : vector<1x1x128xf32> to vector<1x128xf32>
    %31 = vector.broadcast %30 : vector<1x128xf32> to vector<16x128xf32>
    %32 = arith.addf %28, %31 : vector<16x128xf32>
    %cst_31 = arith.constant 0.000000e+00 : f32
    %33 = vector.broadcast %cst_31 : f32 to vector<16x128xf32>
    %34 = arith.maximumf %32, %33 : vector<16x128xf32>
    %c0_32 = arith.constant 0 : index
    %c256 = arith.constant 256 : index
    %35 = vector.load %arg7[%c0_32, %c256] : memref<16x384xf32, #tpu.memory_space<vmem>>, vector<16x128xf32>
    tpu.vector_store %arg7[%c0_32, %c256], %34 {strides = array<i32>} : memref<16x384xf32, #tpu.memory_space<vmem>>, vector<16x128xf32>,
    %c0_33 = arith.constant 0 : index
    %c0_34 = arith.constant 0 : index
    %36 = vector.load %arg7[%c0_33, %c0_34] : memref<16x384xf32, #tpu.memory_space<vmem>>, vector<16x384xf32>
    %c0_35 = arith.constant 0 : index
    %c0_36 = arith.constant 0 : index
    %37 = vector.load %arg4[%c0_35, %c0_36] : memref<384x128xf32, #tpu.memory_space<vmem>>, vector<384x128xf32>
    %cst_37 = arith.constant dense<0.000000e+00> : vector<16x128xf32>
    %38 = tpu.matmul %36, %37, %cst_37 {dimension_numbers = #tpu.dot_dimension_numbers<[1], [0], [0], [1], [0, 0, 1, 1], [], []>} : vector<16x384xf32>, vector<384x128xf32>, vector<16x128xf32> -> vector<16x128xf32>
    %c0_38 = arith.constant 0 : index
    %c0_39 = arith.constant 0 : index
    %39 = vector.load %arg5[%c0_38, %c0_39] : memref<1x128xf32, #tpu.memory_space<vmem>>, vector<1x128xf32>
    %40 = vector.broadcast %39 : vector<1x128xf32> to vector<16x128xf32>
    %41 = arith.addf %38, %40 : vector<16x128xf32>
    %c0_40 = arith.constant 0 : index
    %c0_41 = arith.constant 0 : index
    %42 = vector.load %arg6[%c0_40, %c0_41] : memref<16x128xf32, #tpu.memory_space<vmem>>, vector<16x128xf32>
    tpu.vector_store %arg6[%c0_40, %c0_41], %41 {strides = array<i32>} : memref<16x128xf32, #tpu.memory_space<vmem>>, vector<16x128xf32>,
    return
  }
  func.func @transform_0(%arg0: i32) -> (i32, i32, i32) {
    %c0_i32 = arith.constant 0 : i32
    %c0_i32_0 = arith.constant 0 : i32
    %c0_i32_1 = arith.constant 0 : i32
    return %c0_i32, %arg0, %c0_i32_0 : i32, i32, i32
  }
  func.func @transform_1(%arg0: i32) -> (i32, i32, i32) {
    %c0_i32 = arith.constant 0 : i32
    %c0_i32_0 = arith.constant 0 : i32
    %c0_i32_1 = arith.constant 0 : i32
    %c0_i32_2 = arith.constant 0 : i32
    return %c0_i32, %c0_i32_0, %c0_i32_1 : i32, i32, i32
  }
  func.func @transform_2(%arg0: i32) -> (i32, i32, i32) {
    %c0_i32 = arith.constant 0 : i32
    %c0_i32_0 = arith.constant 0 : i32
    %c0_i32_1 = arith.constant 0 : i32
    %c0_i32_2 = arith.constant 0 : i32
    return %c0_i32, %c0_i32_0, %c0_i32_1 : i32, i32, i32
  }
  func.func @transform_3(%arg0: i32) -> (i32, i32) {
    %c0_i32 = arith.constant 0 : i32
    %c0_i32_0 = arith.constant 0 : i32
    %c0_i32_1 = arith.constant 0 : i32
    return %c0_i32, %c0_i32_0 : i32, i32
  }
  func.func @transform_4(%arg0: i32) -> (i32, i32) {
    %c0_i32 = arith.constant 0 : i32
    %c0_i32_0 = arith.constant 0 : i32
    %c0_i32_1 = arith.constant 0 : i32
    return %c0_i32, %c0_i32_0 : i32, i32
  }
  func.func @transform_5(%arg0: i32) -> (i32, i32) {
    %c0_i32 = arith.constant 0 : i32
    %c0_i32_0 = arith.constant 0 : i32
    return %arg0, %c0_i32 : i32, i32
  }
}

</mosaic_0001>

<llo_original>
// kernel: tpu_custom_call.1
$region0: #{tpu_custom_call.1}
  #allocation0 [shape = 'u32[]', space=smem, size = 0x4, offset = 0x4, fixed_abs, tag = 'smem constant byte address 0x4 - core index']
  #allocation1 [shape = 'u32[144,128]{1,0:T(1,128)}', space=vmem, size = 0x12000, scoped, tag = 'internal scratch']
  #allocation2 [shape = 'f32[16,384]{1,0:T(8,128)}', space=vmem, size = 0x6000, scoped, tag = 'scratch operand']
  %s0 = inlined_call_operand.vmem [shape: f32[3,50,16], index: 0, kind: input, shape index: {}]
  %s1 = inlined_call_operand.vmem [shape: f32[3,16,128], index: 1, kind: input, shape index: {}]
  %s2 = inlined_call_operand.vmem [shape: f32[3,1,128], index: 2, kind: input, shape index: {}]
  %s3 = inlined_call_operand.hbm [shape: f32[384,128], index: 3, kind: input, shape index: {}]
  %s4 = inlined_call_operand.vmem [shape: f32[1,128], index: 4, kind: input, shape index: {}]
  %s5 = inlined_call_operand.hbm [shape: f32[50,128], index: 5, kind: output, shape index: {}]
  %s6 = sld [smem:[#allocation0]]
  $region109: #{tpu_custom_call.1} parent=0
    _
  %s8 = ssub.s32 1, %s6
  %s9 = scalar_select 0, %s8, %s6
  $region1: #{tpu_custom_call.1} parent=0
    #allocation3 [shape = 'u8[49152]{0}', space=vmem, size = 0xc000, scoped, tag = 'input window, operand 0']
    #allocation4 [shape = 'u8[196608]{0}', space=vmem, size = 0x30000, scoped, tag = 'input window, operand 3, single buffered']
    #allocation5 [shape = 's32[2]{0}', space=sflag, size = 0x8, scoped, tag = 'scoped memory for tpu_custom_call.1']
    #allocation6 [shape = 's32[2]{0}', space=sflag, size = 0x8, scoped, tag = 'scoped memory for tpu_custom_call.1']
    #allocation7 [shape = 'u8[16384]{0}', space=vmem, size = 0x4000, scoped, tag = 'output window, operand 0']
    %10 = vsyncpa [#allocation5], 0
    %11 = vsyncpa [#allocation6], 0
    %s12 = scalar_lea.sflag [#allocation6], 1
    %13 = vsyncpa %s12, 0
    loop: start=0, step=1, limit=6
    $region2: #{tpu_custom_call.1} parent=1 // loop_pre_header
      _
    $region3: #{tpu_custom_call.1} parent=1 // loop_header
      %s15 = sphi 0, %s19
      %p16 = scmp.ge.s32.totalorder %s15, 6
      %s25 = sphi 0, %s27
      %s28 = sphi 0, %s25
      %s29 = sphi 0, %s28
      %s45 = sphi 0, %s29
      %s49 = sphi 0, %s49
      %s51 = sphi 0, %s49
      %s52 = sphi 0, %s51
      %s66 = sphi 0, %s52
      %s70 = sphi 0, %s70
      %s72 = sphi 0, %s70
      %s73 = sphi 0, %s72
      %s87 = sphi 0, %s73
      %s91 = sphi 0, %s91
      %s93 = sphi 0, %s91
      %s94 = sphi 0, %s93
      %s108 = sphi 0, %s94
      %s112 = sphi 0, %s112
      %s114 = sphi 0, %s112
      %s115 = sphi 0, %s114
      %s129 = sphi 0, %s115
      %s135 = sphi 0, %s137
      %s138 = sphi 0, %s135
      %s139 = sphi 0, %s138
      %s155 = sphi 0, %s139
    $region4: #{tpu_custom_call.1} parent=1 // loop_header_branch
      %18 = sbr.rel (%p16) target = $region8
    $region5: #{tpu_custom_call.1} parent=1 // loop_body
      %s20 = ssub.s32 %s15, 1
      %s21 = ssub.s32 %s15, 2
      %s22 = sadd.s32 %s15, 1
      %s23 = ssub.s32 %s15, %s22
      %p24 = scmp.eq.s32.totalorder %s23, 0
      %s26 = sadd.s32 %s25, 1
      %s27 = scalar_select %p24, %s25, %s26
      %p30 = pneg %p24
      %p31 = scmp.eq.s32.totalorder %s15, 3
      %p32 = por %p30, %p31
      %p33 = scmp.ne.s32.totalorder %s25, %s28
      %p34 = scmp.eq.s32.totalorder %s15, 0
      %p35 = por %p33, %p34
      %p36 = scmp.ne.s32.totalorder %s25, %s28
      %p37 = scmp.eq.s32.totalorder %s20, 3
      %p38 = por %p36, %p37
      %p39 = scmp.ne.s32.totalorder %s28, %s29
      %p40 = scmp.eq.s32.totalorder %s20, 0
      %p41 = por %p39, %p40
      %p42 = scmp.ne.s32.totalorder %s28, %s29
      %p43 = scmp.eq.s32.totalorder %s21, 3
      %p44 = por %p42, %p43
      %p46 = scmp.ne.s32.totalorder %s29, %s45
      %p47 = scmp.eq.s32.totalorder %s21, 0
      %p48 = por %p46, %p47
      %s50 = sadd.s32 %s49, 1
      %p53 = scmp.eq.s32.totalorder %s15, 3
      %p54 = scmp.ne.s32.totalorder %s49, %s51
      %p55 = scmp.eq.s32.totalorder %s15, 0
      %p56 = por %p54, %p55
      %p57 = scmp.ne.s32.totalorder %s49, %s51
      %p58 = scmp.eq.s32.totalorder %s20, 3
      %p59 = por %p57, %p58
      %p60 = scmp.ne.s32.totalorder %s51, %s52
      %p61 = scmp.eq.s32.totalorder %s20, 0
      %p62 = por %p60, %p61
      %p63 = scmp.ne.s32.totalorder %s51, %s52
      %p64 = scmp.eq.s32.totalorder %s21, 3
      %p65 = por %p63, %p64
      %p67 = scmp.ne.s32.totalorder %s52, %s66
      %p68 = scmp.eq.s32.totalorder %s21, 0
      %p69 = por %p67, %p68
      %s71 = sadd.s32 %s70, 1
      %p74 = scmp.eq.s32.totalorder %s15, 3
      %p75 = scmp.ne.s32.totalorder %s70, %s72
      %p76 = scmp.eq.s32.totalorder %s15, 0
      %p77 = por %p75, %p76
      %p78 = scmp.ne.s32.totalorder %s70, %s72
      %p79 = scmp.eq.s32.totalorder %s20, 3
      %p80 = por %p78, %p79
      %p81 = scmp.ne.s32.totalorder %s72, %s73
      %p82 = scmp.eq.s32.totalorder %s20, 0
      %p83 = por %p81, %p82
      %p84 = scmp.ne.s32.totalorder %s72, %s73
      %p85 = scmp.eq.s32.totalorder %s21, 3
      %p86 = por %p84, %p85
      %p88 = scmp.ne.s32.totalorder %s73, %s87
      %p89 = scmp.eq.s32.totalorder %s21, 0
      %p90 = por %p88, %p89
      %s92 = sadd.s32 %s91, 1
      %p95 = scmp.eq.s32.totalorder %s15, 3
      %p96 = scmp.ne.s32.totalorder %s91, %s93
      %p97 = scmp.eq.s32.totalorder %s15, 0
      %p98 = por %p96, %p97
      %p99 = scmp.ne.s32.totalorder %s91, %s93
      %p100 = scmp.eq.s32.totalorder %s20, 3
      %p101 = por %p99, %p100
      %p102 = scmp.ne.s32.totalorder %s93, %s94
      %p103 = scmp.eq.s32.totalorder %s20, 0
      %p104 = por %p102, %p103
      %p105 = scmp.ne.s32.totalorder %s93, %s94
      %p106 = scmp.eq.s32.totalorder %s21, 3
      %p107 = por %p105, %p106
      %p109 = scmp.ne.s32.totalorder %s94, %s108
      %p110 = scmp.eq.s32.totalorder %s21, 0
      %p111 = por %p109, %p110
      %s113 = sadd.s32 %s112, 1
      %p116 = scmp.eq.s32.totalorder %s15, 3
      %p117 = scmp.ne.s32.totalorder %s112, %s114
      %p118 = scmp.eq.s32.totalorder %s15, 0
      %p119 = por %p117, %p118
      %p120 = scmp.ne.s32.totalorder %s112, %s114
      %p121 = scmp.eq.s32.totalorder %s20, 3
      %p122 = por %p120, %p121
      %p123 = scmp.ne.s32.totalorder %s114, %s115
      %p124 = scmp.eq.s32.totalorder %s20, 0
      %p125 = por %p123, %p124
      %p126 = scmp.ne.s32.totalorder %s114, %s115
      %p127 = scmp.eq.s32.totalorder %s21, 3
      %p128 = por %p126, %p127
      %p130 = scmp.ne.s32.totalorder %s115, %s129
      %p131 = scmp.eq.s32.totalorder %s21, 0
      %p132 = por %p130, %p131
      %s133 = ssub.s32 %s15, %s22
      %p134 = scmp.eq.s32.totalorder %s133, 0
      %s136 = sadd.s32 %s135, 1
      %s137 = scalar_select %p134, %s135, %s136
      %p140 = pneg %p134
      %p141 = scmp.eq.s32.totalorder %s15, 3
      %p142 = por %p140, %p141
      %p143 = scmp.ne.s32.totalorder %s135, %s138
      %p144 = scmp.eq.s32.totalorder %s15, 0
      %p145 = por %p143, %p144
      %p146 = scmp.ne.s32.totalorder %s135, %s138
      %p147 = scmp.eq.s32.totalorder %s20, 3
      %p148 = por %p146, %p147
      %p149 = scmp.ne.s32.totalorder %s138, %s139
      %p150 = scmp.eq.s32.totalorder %s20, 0
      %p151 = por %p149, %p150
      %p152 = scmp.ne.s32.totalorder %s138, %s139
      %p153 = scmp.eq.s32.totalorder %s21, 3
      %p154 = por %p152, %p153
      %p156 = scmp.ne.s32.totalorder %s139, %s155
      %p157 = scmp.eq.s32.totalorder %s21, 0
      %p158 = por %p156, %p157
      %p159 = scmp.le.s32.totalorder 1, %s15
      %p160 = scmp.lt.s32.totalorder %s15, 5
      %p161 = pnand %p159, %p160
      %p162 = pneg %p161
      // Predicated region
      $region9: #{tpu_custom_call.1} parent=5 // pred_check
        _
      $region10: #{tpu_custom_call.1} parent=5 // pred_check_branch
        %164 = sbr.rel (%p161) target = $region12
      $region11: #{tpu_custom_call.1} parent=5 // pred_region
        %s165 = ssub.s32 %s15, 1
        // Predicated region
        $region13: #{tpu_custom_call.1} parent=11 // pred_check
          %p166 = pneg %p62
        $region14: #{tpu_custom_call.1} parent=11 // pred_check_branch
          %168 = sbr.rel (%p166) target = $region16
        $region15: #{tpu_custom_call.1} parent=11 // pred_region
          _
        $region16: #{tpu_custom_call.1} parent=11 // pred_fallthru
          _
        // Predicated region
        $region17: #{tpu_custom_call.1} parent=11 // pred_check
          %p169 = pneg %p83
        $region18: #{tpu_custom_call.1} parent=11 // pred_check_branch
          %171 = sbr.rel (%p169) target = $region20
        $region19: #{tpu_custom_call.1} parent=11 // pred_region
          _
        $region20: #{tpu_custom_call.1} parent=11 // pred_fallthru
          _
        // Predicated region
        $region21: #{tpu_custom_call.1} parent=11 // pred_check
          %p172 = pneg %p104
        $region22: #{tpu_custom_call.1} parent=11 // pred_check_branch
          %174 = sbr.rel (%p172) target = $region24
        $region23: #{tpu_custom_call.1} parent=11 // pred_region
          %s176 = ssub.s32 6144, 6144
          %177 = vsyncadd [#allocation5], %s176
          %s178 = sshll.u32 [#allocation4], 4
          %s179 = int_to_ptr.vmem [resolvable:$true] %s178
          %184 = dma.hbm_to_vmem [thread:$0]  %s3, 6144, %s179, [#allocation5], 128, 128, 8
        $region24: #{tpu_custom_call.1} parent=11 // pred_fallthru
          _
        // Predicated region
        $region25: #{tpu_custom_call.1} parent=11 // pred_check
          %p185 = pneg %p125
        $region26: #{tpu_custom_call.1} parent=11 // pred_check_branch
          %187 = sbr.rel (%p185) target = $region28
        $region27: #{tpu_custom_call.1} parent=11 // pred_region
          _
        $region28: #{tpu_custom_call.1} parent=11 // pred_fallthru
          _
      $region12: #{tpu_custom_call.1} parent=5 // pred_fallthru
        _
      %p188 = scmp.lt.s32.totalorder %s15, 4
      // Predicated region
      $region29: #{tpu_custom_call.1} parent=5 // pred_check
        %p189 = pneg %p188
      $region30: #{tpu_custom_call.1} parent=5 // pred_check_branch
        %191 = sbr.rel (%p189) target = $region32
      $region31: #{tpu_custom_call.1} parent=5 // pred_region
        // Predicated region
        $region33: #{tpu_custom_call.1} parent=31 // pred_check
          %p192 = pneg %p35
        $region34: #{tpu_custom_call.1} parent=31 // pred_check_branch
          %194 = sbr.rel (%p192) target = $region36
        $region35: #{tpu_custom_call.1} parent=31 // pred_region
          %s195 = sand.u32 %s25, 1
          %s196 = sand.u32 %s25, 1
          %s197 = smul.addr %s196, 48
          %s198 = scalar_lea.vmem [#allocation3], %s197
          %s199 = smul.u32 2, %s15
          %s200 = ssub.s32 7, %s199
          %p201 = scmp.lt.s32.totalorder %s200, 2
          %s202 = scalar_select %p201, %s200, 2
          %s203 = smul.u32 384, %s202
          %p204 = scmp.ne.s32.totalorder 0, %s203
          %s205 = smul.addr %s199, 8
          %s206 = scalar_lea.vmem %s0, %s205
          // Predicated region
          $region37: #{tpu_custom_call.1} parent=35 // pred_check
            %p207 = pneg %p204
          $region38: #{tpu_custom_call.1} parent=35 // pred_check_branch
            %209 = sbr.rel (%p207) target = $region40
          $region39: #{tpu_custom_call.1} parent=35 // pred_region
            // Predicated region
            $region41: #{tpu_custom_call.1} parent=39 // pred_check
              _
            $region42: #{tpu_custom_call.1} parent=39 // pred_check_branch
              %211 = sbr.rel (0) target = $region44
            $region43: #{tpu_custom_call.1} parent=39 // pred_region
              // Predicated region
              $region63: #{tpu_custom_call.1} parent=43 // pred_check
                _
              $region64: #{tpu_custom_call.1} parent=43 // pred_check_branch
                %274 = sbr.rel (0) target = $region66
              $region65: #{tpu_custom_call.1} parent=43 // pred_region
                %s275 = sshrl.u32 %s202, 1
                // While loop
                $region67: #{tpu_custom_call.1} parent=65 // loop_pre_header
                  _
                $region68: #{tpu_custom_call.1} parent=65 // loop_header
                  %s277 = sphi 0, %s279
                  %p278 = scmp.ge.s32.totalorder %s277, %s275
                  %s282 = sphi 0, %s299
                  %s283 = sphi %s206, %s302
                  %s284 = sphi %s198, %s303
                $region69: #{tpu_custom_call.1} parent=65 // loop_header_branch
                  %281 = sbr.rel (%p278) target = $region73
                $region70: #{tpu_custom_call.1} parent=65 // loop_body
                  %v285 = vld [vmem:[%s283] sm:$0xff]
                  %286 = vst [vmem:[%s284] sm:$0xff] %v285
                  %v287 = vld [vmem:[%s283 + $0x8] sm:$0xff]
                  %288 = vst [vmem:[%s284 + $0x8] sm:$0xff] %v287
                  %v289 = vld [vmem:[%s283 + $0x38] sm:$0xff]
                  %290 = vst [vmem:[%s284 + $0x10] sm:$0xff] %v289
                  %v291 = vld [vmem:[%s283 + $0x40] sm:$0xff]
                  %292 = vst [vmem:[%s284 + $0x18] sm:$0xff] %v291
                  %v293 = vld [vmem:[%s283 + $0x70] sm:$0xff]
                  %294 = vst [vmem:[%s284 + $0x20] sm:$0xff] %v293
                  %v295 = vld [vmem:[%s283 + $0x78] sm:$0xff]
                  %296 = vst [vmem:[%s284 + $0x28] sm:$0xff] %v295
                  %s297 = sadd.s32 1, %s282
                  %p298 = scmp.ge.s32.totalorder %s297, %s275
                  %s299 = scalar_select %p298, 0, %s297
                  %s300 = smul.u32 %s299, 16
                  %s301 = smul.u32 %s299, 16
                  %s302 = scalar_lea.vmem %s206, %s300
                  %s303 = scalar_lea.vmem %s198, %s301 [#allocation3]
                $region71: #{tpu_custom_call.1} parent=65 // loop_footer
                  %s279 = sadd.s32 %s277, 1
                $region72: #{tpu_custom_call.1} parent=65 // loop_footer_branch
                  %276 = sbr.rel target = $region68
                $region73: #{tpu_custom_call.1} parent=65 // loop_exit
                  _
                %s304 = sshrl.u32 %s202, 1
                %s305 = sand.u32 %s202, 1
                %s306 = smul.u32 %s304, 2
                %s307 = smul.u32 8, %s306
                %s308 = scalar_lea.vmem %s206, %s307
                %s309 = smul.u32 8, %s306
                %s310 = scalar_lea.vmem %s198, %s309 [#allocation3]
                // While loop
                $region74: #{tpu_custom_call.1} parent=65 // loop_pre_header
                  _
                $region75: #{tpu_custom_call.1} parent=65 // loop_header
                  %s312 = sphi 0, %s314
                  %p313 = scmp.ge.s32.totalorder %s312, %s305
                  %s317 = sphi 0, %s328
                  %s318 = sphi %s308, %s331
                  %s319 = sphi %s310, %s332
                $region76: #{tpu_custom_call.1} parent=65 // loop_header_branch
                  %316 = sbr.rel (%p313) target = $region80
                $region77: #{tpu_custom_call.1} parent=65 // loop_body
                  %v320 = vld [vmem:[%s318] sm:$0xff]
                  %321 = vst [vmem:[%s319] sm:$0xff] %v320
                  %v322 = vld [vmem:[%s318 + $0x38] sm:$0xff]
                  %323 = vst [vmem:[%s319 + $0x10] sm:$0xff] %v322
                  %v324 = vld [vmem:[%s318 + $0x70] sm:$0xff]
                  %325 = vst [vmem:[%s319 + $0x20] sm:$0xff] %v324
                  %s326 = sadd.s32 1, %s317
                  %p327 = scmp.ge.s32.totalorder %s326, %s305
                  %s328 = scalar_select %p327, 0, %s326
                  %s329 = smul.u32 %s328, 8
                  %s330 = smul.u32 %s328, 8
                  %s331 = scalar_lea.vmem %s308, %s329
                  %s332 = scalar_lea.vmem %s310, %s330 [#allocation3]
                $region78: #{tpu_custom_call.1} parent=65 // loop_footer
                  %s314 = sadd.s32 %s312, 1
                $region79: #{tpu_custom_call.1} parent=65 // loop_footer_branch
                  %311 = sbr.rel target = $region75
                $region80: #{tpu_custom_call.1} parent=65 // loop_exit
                  _
              $region66: #{tpu_custom_call.1} parent=43 // pred_fallthru
                _
              // Predicated region
              $region81: #{tpu_custom_call.1} parent=43 // pred_check
                _
              $region82: #{tpu_custom_call.1} parent=43 // pred_check_branch
                %334 = sbr.rel target = $region84
              $region83: #{tpu_custom_call.1} parent=43 // pred_region
                _
              $region84: #{tpu_custom_call.1} parent=43 // pred_fallthru
                _
            $region44: #{tpu_custom_call.1} parent=39 // pred_fallthru
              _
            // Predicated region
            $region45: #{tpu_custom_call.1} parent=39 // pred_check
              _
            $region46: #{tpu_custom_call.1} parent=39 // pred_check_branch
              %213 = sbr.rel target = $region48
            $region47: #{tpu_custom_call.1} parent=39 // pred_region
              %s215 = sshrl.u32 %s202, 1
              // While loop
              $region49: #{tpu_custom_call.1} parent=47 // loop_pre_header
                _
              $region50: #{tpu_custom_call.1} parent=47 // loop_header
                %s217 = sphi 0, %s219
                %p218 = scmp.ge.s32.totalorder %s217, %s215
                %s222 = sphi 0, %s239
                %s223 = sphi %s206, %s242
                %s224 = sphi %s198, %s243
              $region51: #{tpu_custom_call.1} parent=47 // loop_header_branch
                %221 = sbr.rel (%p218) target = $region55
              $region52: #{tpu_custom_call.1} parent=47 // loop_body
                %v225 = vld [vmem:[%s223] sm:$0xff]
                %226 = vst [vmem:[%s224] sm:$0xff] %v225
                %v227 = vld [vmem:[%s223 + $0x8] sm:$0xff]
                %228 = vst [vmem:[%s224 + $0x8] sm:$0xff] %v227
                %v229 = vld [vmem:[%s223 + $0x38] sm:$0xff]
                %230 = vst [vmem:[%s224 + $0x10] sm:$0xff] %v229
                %v231 = vld [vmem:[%s223 + $0x40] sm:$0xff]
                %232 = vst [vmem:[%s224 + $0x18] sm:$0xff] %v231
                %v233 = vld [vmem:[%s223 + $0x70] sm:$0xff]
                %234 = vst [vmem:[%s224 + $0x20] sm:$0xff] %v233
                %v235 = vld [vmem:[%s223 + $0x78] sm:$0xff]
                %236 = vst [vmem:[%s224 + $0x28] sm:$0xff] %v235
                %s237 = sadd.s32 1, %s222
                %p238 = scmp.ge.s32.totalorder %s237, %s215
                %s239 = scalar_select %p238, 0, %s237
                %s240 = smul.u32 %s239, 16
                %s241 = smul.u32 %s239, 16
                %s242 = scalar_lea.vmem %s206, %s240
                %s243 = scalar_lea.vmem %s198, %s241 [#allocation3]
              $region53: #{tpu_custom_call.1} parent=47 // loop_footer
                %s219 = sadd.s32 %s217, 1
              $region54: #{tpu_custom_call.1} parent=47 // loop_footer_branch
                %216 = sbr.rel target = $region50
              $region55: #{tpu_custom_call.1} parent=47 // loop_exit
                _
              %s244 = sshrl.u32 %s202, 1
              %s245 = sand.u32 %s202, 1
              %s246 = smul.u32 %s244, 2
              %s247 = smul.u32 8, %s246
              %s248 = scalar_lea.vmem %s206, %s247
              %s249 = smul.u32 8, %s246
              %s250 = scalar_lea.vmem %s198, %s249 [#allocation3]
              // While loop
              $region56: #{tpu_custom_call.1} parent=47 // loop_pre_header
                _
              $region57: #{tpu_custom_call.1} parent=47 // loop_header
                %s252 = sphi 0, %s254
                %p253 = scmp.ge.s32.totalorder %s252, %s245
                %s257 = sphi 0, %s268
                %s258 = sphi %s248, %s271
                %s259 = sphi %s250, %s272
              $region58: #{tpu_custom_call.1} parent=47 // loop_header_branch
                %256 = sbr.rel (%p253) target = $region62
              $region59: #{tpu_custom_call.1} parent=47 // loop_body
                %v260 = vld [vmem:[%s258] sm:$0xff]
                %261 = vst [vmem:[%s259] sm:$0xff] %v260
                %v262 = vld [vmem:[%s258 + $0x38] sm:$0xff]
                %263 = vst [vmem:[%s259 + $0x10] sm:$0xff] %v262
                %v264 = vld [vmem:[%s258 + $0x70] sm:$0xff]
                %265 = vst [vmem:[%s259 + $0x20] sm:$0xff] %v264
                %s266 = sadd.s32 1, %s257
                %p267 = scmp.ge.s32.totalorder %s266, %s245
                %s268 = scalar_select %p267, 0, %s266
                %s269 = smul.u32 %s268, 8
                %s270 = smul.u32 %s268, 8
                %s271 = scalar_lea.vmem %s248, %s269
                %s272 = scalar_lea.vmem %s250, %s270 [#allocation3]
              $region60: #{tpu_custom_call.1} parent=47 // loop_footer
                %s254 = sadd.s32 %s252, 1
              $region61: #{tpu_custom_call.1} parent=47 // loop_footer_branch
                %251 = sbr.rel target = $region57
              $region62: #{tpu_custom_call.1} parent=47 // loop_exit
                _
            $region48: #{tpu_custom_call.1} parent=39 // pred_fallthru
              _
          $region40: #{tpu_custom_call.1} parent=35 // pred_fallthru
            _
          %335 = vnop
        $region36: #{tpu_custom_call.1} parent=31 // pred_fallthru
          _
      $region32: #{tpu_custom_call.1} parent=5 // pred_fallthru
        _
      %p336 = scmp.le.s32.totalorder 1, %s15
      %p337 = scmp.lt.s32.totalorder %s15, 5
      %p338 = pnand %p336, %p337
      %p339 = pneg %p338
      // Predicated region
      $region85: #{tpu_custom_call.1} parent=5 // pred_check
        _
      $region86: #{tpu_custom_call.1} parent=5 // pred_check_branch
        %341 = sbr.rel (%p338) target = $region88
      $region87: #{tpu_custom_call.1} parent=5 // pred_region
        %s342 = ssub.s32 %s15, 1
        %s343 = sand.u32 %s28, 1
        %s344 = sand.u32 %s28, 1
        %s345 = smul.addr %s344, 48
        %s346 = scalar_lea.vmem [#allocation3], %s345
        // Predicated region
        $region89: #{tpu_custom_call.1} parent=87 // pred_check
          %p347 = pneg %p41
        $region90: #{tpu_custom_call.1} parent=87 // pred_check_branch
          %349 = sbr.rel (%p347) target = $region92
        $region91: #{tpu_custom_call.1} parent=87 // pred_region
          _
        $region92: #{tpu_custom_call.1} parent=87 // pred_fallthru
          _
        // Predicated region
        $region93: #{tpu_custom_call.1} parent=87 // pred_check
          %p350 = pneg %p104
        $region94: #{tpu_custom_call.1} parent=87 // pred_check_branch
          %352 = sbr.rel (%p350) target = $region96
        $region95: #{tpu_custom_call.1} parent=87 // pred_region
          %353 = dma.done [#allocation5], 6144
        $region96: #{tpu_custom_call.1} parent=87 // pred_fallthru
          _
        %s354 = sand.u32 %s28, 1
        %s355 = sand.u32 %s28, 1
        %s356 = smul.addr %s355, 48
        %s357 = scalar_lea.vmem [#allocation3], %s356
        %p358 = pneg %p41
        %p359 = pneg %p38
        %p360 = pneg %p62
        %p361 = pneg %p59
        %p362 = pneg %p83
        %p363 = pneg %p80
        %p364 = pneg %p104
        %p365 = pneg %p101
        %p366 = pneg %p125
        %p367 = pneg %p122
        %p368 = pneg %p151
        %p369 = pneg %p148
        %s370 = sand.u32 %s138, 1
        %s371 = scalar_lea.sflag [#allocation6], %s370
        %s372 = sand.u32 %s138, 1
        %s373 = smul.addr %s372, 16
        %s374 = scalar_lea.vmem [#allocation7], %s373
        %s375 = smul.u32 2, %s20
        %s376 = ssub.s32 7, %s375
        %p377 = scmp.lt.s32.totalorder %s376, 2
        %s378 = scalar_select %p377, %s376, 2
        %s379 = smul.u32 384, %s378
        %s380 = smul.u32 2, %s20
        %s381 = ssub.s32 7, %s380
        %p382 = scmp.lt.s32.totalorder %s381, 2
        %s383 = scalar_select %p382, %s381, 2
        %s384 = smul.u32 128, %s383
        %v385 = vld [vmem:[%s346] sm:$0xff]
        %v386 = vld [vmem:[%s346 + $0x8] sm:$0xff]
        %v387 = vld [vmem:[%s1] sm:$0xff]
        %v388 = vld [vmem:[%s1 + $0x8] sm:$0xff]
        %v389 = vld [vmem:[%s2] sm:$0x1]
        %v391 = vlaneseq
        %v392 = vshrl.u32 %v391, 7
        %v393 = vsub.s32 0, %v392
        %v394 = vrot.slane %v389, %v393
        %vm396 = vcmask 130048
        %v398 = vsel %vm396, %v385, 0
        %v401 = vsel %vm396, %v386, 0
        %403 = vmatprep.subr.mxu0 0.0
        %404 = vmatpush1.msra.mxu0 %v387
        %405 = vmatprep.subr.mxu0 0.0
        %406 = vmatpush1.msra.mxu0 %v388
        %407 = vmatprep.subr.mxu0 0.0
        %408 = vmatpush1.msra.mxu0 0.0
        %409 = vmatprep.subr.mxu0 0.0
        %410 = vmatpush1.msra.mxu0 0.0
        %411 = vmatprep.subr.mxu0 0.0
        %412 = vmatpush1.msra.mxu0 0.0
        %413 = vmatprep.subr.mxu0 0.0
        %414 = vmatpush1.msra.mxu0 0.0
        %415 = vmatprep.subr.mxu0 0.0
        %416 = vmatpush1.msra.mxu0 0.0
        %417 = vmatprep.subr.mxu0 0.0
        %418 = vmatpush1.msra.mxu0 0.0
        %419 = vmatprep.subr.mxu0 0.0
        %420 = vmatpush1.msra.mxu0 0.0
        %421 = vmatprep.subr.mxu0 0.0
        %422 = vmatpush1.msra.mxu0 0.0
        %423 = vmatprep.subr.mxu0 0.0
        %424 = vmatpush1.msra.mxu0 0.0
        %425 = vmatprep.subr.mxu0 0.0
        %426 = vmatpush1.msra.mxu0 0.0
        %427 = vmatprep.subr.mxu0 0.0
        %428 = vmatpush1.msra.mxu0 0.0
        %429 = vmatprep.subr.mxu0 0.0
        %430 = vmatpush1.msra.mxu0 0.0
        %431 = vmatprep.subr.mxu0 0.0
        %432 = vmatpush1.msra.mxu0 0.0
        %433 = vmatprep.subr.mxu0 0.0
        %434 = vmatpush1.msra.mxu0 0.0
        %435 = vmatprep.subr.mxu0 0.0
        %436 = vmatpush1.msra.mxu0 0.0
        %437 = vmatprep.subr.mxu0 0.0
        %438 = vmatpush1.msra.mxu0 0.0
        %439 = vmatprep.subr.mxu0 0.0
        %440 = vmatpush1.msra.mxu0 0.0
        %441 = vmatprep.subr.mxu0 0.0
        %442 = vmatpush1.msra.mxu0 0.0
        %443 = vmatprep.subr.mxu0 0.0
        %444 = vmatpush1.msra.mxu0 0.0
        %445 = vmatprep.subr.mxu0 0.0
        %446 = vmatpush1.msra.mxu0 0.0
        %447 = vmatprep.subr.mxu0 0.0
        %448 = vmatpush1.msra.mxu0 0.0
        %449 = vmatprep.subr.mxu0 0.0
        %450 = vmatpush1.msra.mxu0 0.0
        %451 = vmatprep.subr.mxu0 0.0
        %452 = vmatpush1.msra.mxu0 0.0
        %453 = vmatprep.subr.mxu0 0.0
        %454 = vmatpush1.msra.mxu0 0.0
        %455 = vmatprep.subr.mxu0 0.0
        %456 = vmatpush1.msra.mxu0 0.0
        %457 = vmatprep.subr.mxu0 0.0
        %458 = vmatpush1.msra.mxu0 0.0
        %459 = vmatprep.subr.mxu0 0.0
        %460 = vmatpush1.msra.mxu0 0.0
        %461 = vmatprep.subr.mxu0 0.0
        %462 = vmatpush1.msra.mxu0 0.0
        %463 = vmatprep.subr.mxu0 0.0
        %464 = vmatpush1.msra.mxu0 0.0
        %465 = vmatprep.subr.mxu0 0.0
        %466 = vmatpush1.msra.mxu0 0.0
        %467 = vmatprep.mubr.f32.mxu0 0.0
        %468 = vmatmul.mubr.f32.gmra.mrb[0].mxu0 %v398
        %v469 = vpop.f32.mrb[0].mxu0
        %v470 = vadd.f32 %v394, %v469
        %v471 = vpop.f32.mrb[0].mxu0
        %472 = vmatprep.mubr.f32.mxu0 0.0
        %473 = vmatmul.mubr.f32.gmra.mrb[0].mxu0 %v401
        %v474 = vpop.f32.mrb[0].mxu0
        %v475 = vadd.f32 %v394, %v474
        %v476 = vpop.f32.mrb[0].mxu0
        %477 = vdwg.mxu0
        %v478 = vmax.f32 %v470, 0.0
        %v479 = vmax.f32 %v475, 0.0
        %480 = vst [vmem:[#allocation2] sm:$0xff] %v478
        %481 = vst [vmem:[#allocation2 + $0x18] sm:$0xff] %v479
        %s482 = scalar_lea.vmem %s346, 16 [#allocation3]
        %v483 = vld [vmem:[%s482] sm:$0xff]
        %v484 = vld [vmem:[%s482 + $0x8] sm:$0xff]
        %s485 = scalar_lea.vmem %s1, 16
        %v486 = vld [vmem:[%s485] sm:$0xff]
        %v487 = vld [vmem:[%s485 + $0x8] sm:$0xff]
        %s488 = scalar_lea.vmem %s2, 1
        %v489 = vld [vmem:[%s488] sm:$0x1]
        %v491 = vlaneseq
        %v492 = vshrl.u32 %v491, 7
        %v493 = vsub.s32 0, %v492
        %v494 = vrot.slane %v489, %v493
        %v497 = vsel %vm396, %v483, 0
        %v500 = vsel %vm396, %v484, 0
        %502 = vmatprep.subr.mxu0 0.0
        %503 = vmatpush1.msra.mxu0 %v486
        %504 = vmatprep.subr.mxu0 0.0
        %505 = vmatpush1.msra.mxu0 %v487
        %506 = vmatprep.subr.mxu0 0.0
        %507 = vmatpush1.msra.mxu0 0.0
        %508 = vmatprep.subr.mxu0 0.0
        %509 = vmatpush1.msra.mxu0 0.0
        %510 = vmatprep.subr.mxu0 0.0
        %511 = vmatpush1.msra.mxu0 0.0
        %512 = vmatprep.subr.mxu0 0.0
        %513 = vmatpush1.msra.mxu0 0.0
        %514 = vmatprep.subr.mxu0 0.0
        %515 = vmatpush1.msra.mxu0 0.0
        %516 = vmatprep.subr.mxu0 0.0
        %517 = vmatpush1.msra.mxu0 0.0
        %518 = vmatprep.subr.mxu0 0.0
        %519 = vmatpush1.msra.mxu0 0.0
        %520 = vmatprep.subr.mxu0 0.0
        %521 = vmatpush1.msra.mxu0 0.0
        %522 = vmatprep.subr.mxu0 0.0
        %523 = vmatpush1.msra.mxu0 0.0
        %524 = vmatprep.subr.mxu0 0.0
        %525 = vmatpush1.msra.mxu0 0.0
        %526 = vmatprep.subr.mxu0 0.0
        %527 = vmatpush1.msra.mxu0 0.0
        %528 = vmatprep.subr.mxu0 0.0
        %529 = vmatpush1.msra.mxu0 0.0
        %530 = vmatprep.subr.mxu0 0.0
        %531 = vmatpush1.msra.mxu0 0.0
        %532 = vmatprep.subr.mxu0 0.0
        %533 = vmatpush1.msra.mxu0 0.0
        %534 = vmatprep.subr.mxu0 0.0
        %535 = vmatpush1.msra.mxu0 0.0
        %536 = vmatprep.subr.mxu0 0.0
        %537 = vmatpush1.msra.mxu0 0.0
        %538 = vmatprep.subr.mxu0 0.0
        %539 = vmatpush1.msra.mxu0 0.0
        %540 = vmatprep.subr.mxu0 0.0
        %541 = vmatpush1.msra.mxu0 0.0
        %542 = vmatprep.subr.mxu0 0.0
        %543 = vmatpush1.msra.mxu0 0.0
        %544 = vmatprep.subr.mxu0 0.0
        %545 = vmatpush1.msra.mxu0 0.0
        %546 = vmatprep.subr.mxu0 0.0
        %547 = vmatpush1.msra.mxu0 0.0
        %548 = vmatprep.subr.mxu0 0.0
        %549 = vmatpush1.msra.mxu0 0.0
        %550 = vmatprep.subr.mxu0 0.0
        %551 = vmatpush1.msra.mxu0 0.0
        %552 = vmatprep.subr.mxu0 0.0
        %553 = vmatpush1.msra.mxu0 0.0
        %554 = vmatprep.subr.mxu0 0.0
        %555 = vmatpush1.msra.mxu0 0.0
        %556 = vmatprep.subr.mxu0 0.0
        %557 = vmatpush1.msra.mxu0 0.0
        %558 = vmatprep.subr.mxu0 0.0
        %559 = vmatpush1.msra.mxu0 0.0
        %560 = vmatprep.subr.mxu0 0.0
        %561 = vmatpush1.msra.mxu0 0.0
        %562 = vmatprep.subr.mxu0 0.0
        %563 = vmatpush1.msra.mxu0 0.0
        %564 = vmatprep.subr.mxu0 0.0
        %565 = vmatpush1.msra.mxu0 0.0
        %566 = vmatprep.mubr.f32.mxu0 0.0
        %567 = vmatmul.mubr.f32.gmra.mrb[0].mxu0 %v497
        %v568 = vpop.f32.mrb[0].mxu0
        %v569 = vadd.f32 %v494, %v568
        %v570 = vpop.f32.mrb[0].mxu0
        %571 = vmatprep.mubr.f32.mxu0 0.0
        %572 = vmatmul.mubr.f32.gmra.mrb[0].mxu0 %v500
        %v573 = vpop.f32.mrb[0].mxu0
        %v574 = vadd.f32 %v494, %v573
        %v575 = vpop.f32.mrb[0].mxu0
        %576 = vdwg.mxu0
        %v577 = vmax.f32 %v569, 0.0
        %v578 = vmax.f32 %v574, 0.0
        %579 = vst [vmem:[#allocation2 + $0x8] sm:$0xff] %v577
        %580 = vst [vmem:[#allocation2 + $0x20] sm:$0xff] %v578
        %s581 = scalar_lea.vmem %s346, 32 [#allocation3]
        %v582 = vld [vmem:[%s581] sm:$0xff]
        %v583 = vld [vmem:[%s581 + $0x8] sm:$0xff]
        %s584 = scalar_lea.vmem %s1, 32
        %v585 = vld [vmem:[%s584] sm:$0xff]
        %v586 = vld [vmem:[%s584 + $0x8] sm:$0xff]
        %s587 = scalar_lea.vmem %s2, 2
        %v588 = vld [vmem:[%s587] sm:$0x1]
        %v590 = vlaneseq
        %v591 = vshrl.u32 %v590, 7
        %v592 = vsub.s32 0, %v591
        %v593 = vrot.slane %v588, %v592
        %v596 = vsel %vm396, %v582, 0
        %v599 = vsel %vm396, %v583, 0
        %601 = vmatprep.subr.mxu0 0.0
        %602 = vmatpush1.msra.mxu0 %v585
        %603 = vmatprep.subr.mxu0 0.0
        %604 = vmatpush1.msra.mxu0 %v586
        %605 = vmatprep.subr.mxu0 0.0
        %606 = vmatpush1.msra.mxu0 0.0
        %607 = vmatprep.subr.mxu0 0.0
        %608 = vmatpush1.msra.mxu0 0.0
        %609 = vmatprep.subr.mxu0 0.0
        %610 = vmatpush1.msra.mxu0 0.0
        %611 = vmatprep.subr.mxu0 0.0
        %612 = vmatpush1.msra.mxu0 0.0
        %613 = vmatprep.subr.mxu0 0.0
        %614 = vmatpush1.msra.mxu0 0.0
        %615 = vmatprep.subr.mxu0 0.0
        %616 = vmatpush1.msra.mxu0 0.0
        %617 = vmatprep.subr.mxu0 0.0
        %618 = vmatpush1.msra.mxu0 0.0
        %619 = vmatprep.subr.mxu0 0.0
        %620 = vmatpush1.msra.mxu0 0.0
        %621 = vmatprep.subr.mxu0 0.0
        %622 = vmatpush1.msra.mxu0 0.0
        %623 = vmatprep.subr.mxu0 0.0
        %624 = vmatpush1.msra.mxu0 0.0
        %625 = vmatprep.subr.mxu0 0.0
        %626 = vmatpush1.msra.mxu0 0.0
        %627 = vmatprep.subr.mxu0 0.0
        %628 = vmatpush1.msra.mxu0 0.0
        %629 = vmatprep.subr.mxu0 0.0
        %630 = vmatpush1.msra.mxu0 0.0
        %631 = vmatprep.subr.mxu0 0.0
        %632 = vmatpush1.msra.mxu0 0.0
        %633 = vmatprep.subr.mxu0 0.0
        %634 = vmatpush1.msra.mxu0 0.0
        %635 = vmatprep.subr.mxu0 0.0
        %636 = vmatpush1.msra.mxu0 0.0
        %637 = vmatprep.subr.mxu0 0.0
        %638 = vmatpush1.msra.mxu0 0.0
        %639 = vmatprep.subr.mxu0 0.0
        %640 = vmatpush1.msra.mxu0 0.0
        %641 = vmatprep.subr.mxu0 0.0
        %642 = vmatpush1.msra.mxu0 0.0
        %643 = vmatprep.subr.mxu0 0.0
        %644 = vmatpush1.msra.mxu0 0.0
        %645 = vmatprep.subr.mxu0 0.0
        %646 = vmatpush1.msra.mxu0 0.0
        %647 = vmatprep.subr.mxu0 0.0
        %648 = vmatpush1.msra.mxu0 0.0
        %649 = vmatprep.subr.mxu0 0.0
        %650 = vmatpush1.msra.mxu0 0.0
        %651 = vmatprep.subr.mxu0 0.0
        %652 = vmatpush1.msra.mxu0 0.0
        %653 = vmatprep.subr.mxu0 0.0
        %654 = vmatpush1.msra.mxu0 0.0
        %655 = vmatprep.subr.mxu0 0.0
        %656 = vmatpush1.msra.mxu0 0.0
        %657 = vmatprep.subr.mxu0 0.0
        %658 = vmatpush1.msra.mxu0 0.0
        %659 = vmatprep.subr.mxu0 0.0
        %660 = vmatpush1.msra.mxu0 0.0
        %661 = vmatprep.subr.mxu0 0.0
        %662 = vmatpush1.msra.mxu0 0.0
        %663 = vmatprep.subr.mxu0 0.0
        %664 = vmatpush1.msra.mxu0 0.0
        %665 = vmatprep.mubr.f32.mxu0 0.0
        %666 = vmatmul.mubr.f32.gmra.mrb[0].mxu0 %v596
        %v667 = vpop.f32.mrb[0].mxu0
        %v668 = vadd.f32 %v593, %v667
        %v669 = vpop.f32.mrb[0].mxu0
        %670 = vmatprep.mubr.f32.mxu0 0.0
        %671 = vmatmul.mubr.f32.gmra.mrb[0].mxu0 %v599
        %v672 = vpop.f32.mrb[0].mxu0
        %v673 = vadd.f32 %v593, %v672
        %v674 = vpop.f32.mrb[0].mxu0
        %675 = vdwg.mxu0
        %v676 = vmax.f32 %v668, 0.0
        %v677 = vmax.f32 %v673, 0.0
        %678 = vst [vmem:[#allocation2 + $0x10] sm:$0xff] %v676
        %679 = vst [vmem:[#allocation2 + $0x28] sm:$0xff] %v677
        %v680 = vld [vmem:[#allocation2] sm:$0xff]
        %v681 = vld [vmem:[#allocation2 + $0x8] sm:$0xff]
        %v682 = vld [vmem:[#allocation2 + $0x10] sm:$0xff]
        %v683 = vld [vmem:[#allocation2 + $0x18] sm:$0xff]
        %v684 = vld [vmem:[#allocation2 + $0x20] sm:$0xff]
        %v685 = vld [vmem:[#allocation2 + $0x28] sm:$0xff]
        %v686 = vld [vmem:[#allocation4] sm:$0xff]
        %v687 = vld [vmem:[#allocation4 + $0x8] sm:$0xff]
        %v688 = vld [vmem:[#allocation4 + $0x10] sm:$0xff]
        %v689 = vld [vmem:[#allocation4 + $0x18] sm:$0xff]
        %v690 = vld [vmem:[#allocation4 + $0x20] sm:$0xff]
        %v691 = vld [vmem:[#allocation4 + $0x28] sm:$0xff]
        %v692 = vld [vmem:[#allocation4 + $0x30] sm:$0xff]
        %v693 = vld [vmem:[#allocation4 + $0x38] sm:$0xff]
        %v694 = vld [vmem:[#allocation4 + $0x40] sm:$0xff]
        %v695 = vld [vmem:[#allocation4 + $0x48] sm:$0xff]
        %v696 = vld [vmem:[#allocation4 + $0x50] sm:$0xff]
        %v697 = vld [vmem:[#allocation4 + $0x58] sm:$0xff]
        %v698 = vld [vmem:[#allocation4 + $0x60] sm:$0xff]
        %v699 = vld [vmem:[#allocation4 + $0x68] sm:$0xff]
        %v700 = vld [vmem:[#allocation4 + $0x70] sm:$0xff]
        %v701 = vld [vmem:[#allocation4 + $0x78] sm:$0xff]
        %v702 = vld [vmem:[#allocation4 + $0x80] sm:$0xff]
        %v703 = vld [vmem:[#allocation4 + $0x88] sm:$0xff]
        %v704 = vld [vmem:[#allocation4 + $0x90] sm:$0xff]
        %v705 = vld [vmem:[#allocation4 + $0x98] sm:$0xff]
        %v706 = vld [vmem:[#allocation4 + $0xa0] sm:$0xff]
        %v707 = vld [vmem:[#allocation4 + $0xa8] sm:$0xff]
        %v708 = vld [vmem:[#allocation4 + $0xb0] sm:$0xff]
        %v709 = vld [vmem:[#allocation4 + $0xb8] sm:$0xff]
        %v710 = vld [vmem:[#allocation4 + $0xc0] sm:$0xff]
        %v711 = vld [vmem:[#allocation4 + $0xc8] sm:$0xff]
        %v712 = vld [vmem:[#allocation4 + $0xd0] sm:$0xff]
        %v713 = vld [vmem:[#allocation4 + $0xd8] sm:$0xff]
        %v714 = vld [vmem:[#allocation4 + $0xe0] sm:$0xff]
        %v715 = vld [vmem:[#allocation4 + $0xe8] sm:$0xff]
        %v716 = vld [vmem:[#allocation4 + $0xf0] sm:$0xff]
        %v717 = vld [vmem:[#allocation4 + $0xf8] sm:$0xff]
        %v718 = vld [vmem:[#allocation4 + $0x100] sm:$0xff]
        %v719 = vld [vmem:[#allocation4 + $0x108] sm:$0xff]
        %v720 = vld [vmem:[#allocation4 + $0x110] sm:$0xff]
        %v721 = vld [vmem:[#allocation4 + $0x118] sm:$0xff]
        %v722 = vld [vmem:[#allocation4 + $0x120] sm:$0xff]
        %v723 = vld [vmem:[#allocation4 + $0x128] sm:$0xff]
        %v724 = vld [vmem:[#allocation4 + $0x130] sm:$0xff]
        %v725 = vld [vmem:[#allocation4 + $0x138] sm:$0xff]
        %v726 = vld [vmem:[#allocation4 + $0x140] sm:$0xff]
        %v727 = vld [vmem:[#allocation4 + $0x148] sm:$0xff]
        %v728 = vld [vmem:[#allocation4 + $0x150] sm:$0xff]
        %v729 = vld [vmem:[#allocation4 + $0x158] sm:$0xff]
        %v730 = vld [vmem:[#allocation4 + $0x160] sm:$0xff]
        %v731 = vld [vmem:[#allocation4 + $0x168] sm:$0xff]
        %v732 = vld [vmem:[#allocation4 + $0x170] sm:$0xff]
        %v733 = vld [vmem:[#allocation4 + $0x178] sm:$0xff]
        %v734 = vld [vmem:[%s4] sm:$0x1]
        %v736 = vlaneseq
        %v737 = vshrl.u32 %v736, 7
        %v738 = vsub.s32 0, %v737
        %v739 = vrot.slane %v734, %v738
        %741 = vmatprep.subr.mxu0 0.0
        %742 = vmatpush1.msra.mxu0 %v686
        %743 = vmatprep.subr.mxu0 0.0
        %744 = vmatpush1.msra.mxu0 %v687
        %745 = vmatprep.subr.mxu0 0.0
        %746 = vmatpush1.msra.mxu0 %v688
        %747 = vmatprep.subr.mxu0 0.0
        %748 = vmatpush1.msra.mxu0 %v689
        %749 = vmatprep.subr.mxu0 0.0
        %750 = vmatpush1.msra.mxu0 %v690
        %751 = vmatprep.subr.mxu0 0.0
        %752 = vmatpush1.msra.mxu0 %v691
        %753 = vmatprep.subr.mxu0 0.0
        %754 = vmatpush1.msra.mxu0 %v692
        %755 = vmatprep.subr.mxu0 0.0
        %756 = vmatpush1.msra.mxu0 %v693
        %757 = vmatprep.subr.mxu0 0.0
        %758 = vmatpush1.msra.mxu0 %v694
        %759 = vmatprep.subr.mxu0 0.0
        %760 = vmatpush1.msra.mxu0 %v695
        %761 = vmatprep.subr.mxu0 0.0
        %762 = vmatpush1.msra.mxu0 %v696
        %763 = vmatprep.subr.mxu0 0.0
        %764 = vmatpush1.msra.mxu0 %v697
        %765 = vmatprep.subr.mxu0 0.0
        %766 = vmatpush1.msra.mxu0 %v698
        %767 = vmatprep.subr.mxu0 0.0
        %768 = vmatpush1.msra.mxu0 %v699
        %769 = vmatprep.subr.mxu0 0.0
        %770 = vmatpush1.msra.mxu0 %v700
        %771 = vmatprep.subr.mxu0 0.0
        %772 = vmatpush1.msra.mxu0 %v701
        %773 = vmatprep.subr.mxu0 0.0
        %774 = vmatpush1.msra.mxu0 %v702
        %775 = vmatprep.subr.mxu0 0.0
        %776 = vmatpush1.msra.mxu0 %v703
        %777 = vmatprep.subr.mxu0 0.0
        %778 = vmatpush1.msra.mxu0 %v704
        %779 = vmatprep.subr.mxu0 0.0
        %780 = vmatpush1.msra.mxu0 %v705
        %781 = vmatprep.subr.mxu0 0.0
        %782 = vmatpush1.msra.mxu0 %v706
        %783 = vmatprep.subr.mxu0 0.0
        %784 = vmatpush1.msra.mxu0 %v707
        %785 = vmatprep.subr.mxu0 0.0
        %786 = vmatpush1.msra.mxu0 %v708
        %787 = vmatprep.subr.mxu0 0.0
        %788 = vmatpush1.msra.mxu0 %v709
        %789 = vmatprep.subr.mxu0 0.0
        %790 = vmatpush1.msra.mxu0 %v710
        %791 = vmatprep.subr.mxu0 0.0
        %792 = vmatpush1.msra.mxu0 %v711
        %793 = vmatprep.subr.mxu0 0.0
        %794 = vmatpush1.msra.mxu0 %v712
        %795 = vmatprep.subr.mxu0 0.0
        %796 = vmatpush1.msra.mxu0 %v713
        %797 = vmatprep.subr.mxu0 0.0
        %798 = vmatpush1.msra.mxu0 %v714
        %799 = vmatprep.subr.mxu0 0.0
        %800 = vmatpush1.msra.mxu0 %v715
        %801 = vmatprep.subr.mxu0 0.0
        %802 = vmatpush1.msra.mxu0 %v716
        %803 = vmatprep.subr.mxu0 0.0
        %804 = vmatpush1.msra.mxu0 %v717
        %805 = vmatprep.mubr.f32.mxu0 %v681
        %806 = vmatmul.mubr.f32.gmra.mrb[0].mxu0 %v680
        %v807 = vpop.f32.mrb[0].mxu0
        %v808 = vadd.f32 %v739, %v807
        %v809 = vpop.f32.mrb[0].mxu0
        %810 = vmatprep.mubr.f32.mxu0 %v684
        %811 = vmatmul.mubr.f32.gmra.mrb[0].mxu0 %v683
        %v812 = vpop.f32.mrb[0].mxu0
        %v813 = vadd.f32 %v739, %v812
        %v814 = vpop.f32.mrb[0].mxu0
        %815 = vdwg.mxu0
        %816 = vmatprep.subr.mxu0 0.0
        %817 = vmatpush1.msra.mxu0 %v718
        %818 = vmatprep.subr.mxu0 0.0
        %819 = vmatpush1.msra.mxu0 %v719
        %820 = vmatprep.subr.mxu0 0.0
        %821 = vmatpush1.msra.mxu0 %v720
        %822 = vmatprep.subr.mxu0 0.0
        %823 = vmatpush1.msra.mxu0 %v721
        %824 = vmatprep.subr.mxu0 0.0
        %825 = vmatpush1.msra.mxu0 %v722
        %826 = vmatprep.subr.mxu0 0.0
        %827 = vmatpush1.msra.mxu0 %v723
        %828 = vmatprep.subr.mxu0 0.0
        %829 = vmatpush1.msra.mxu0 %v724
        %830 = vmatprep.subr.mxu0 0.0
        %831 = vmatpush1.msra.mxu0 %v725
        %832 = vmatprep.subr.mxu0 0.0
        %833 = vmatpush1.msra.mxu0 %v726
        %834 = vmatprep.subr.mxu0 0.0
        %835 = vmatpush1.msra.mxu0 %v727
        %836 = vmatprep.subr.mxu0 0.0
        %837 = vmatpush1.msra.mxu0 %v728
        %838 = vmatprep.subr.mxu0 0.0
        %839 = vmatpush1.msra.mxu0 %v729
        %840 = vmatprep.subr.mxu0 0.0
        %841 = vmatpush1.msra.mxu0 %v730
        %842 = vmatprep.subr.mxu0 0.0
        %843 = vmatpush1.msra.mxu0 %v731
        %844 = vmatprep.subr.mxu0 0.0
        %845 = vmatpush1.msra.mxu0 %v732
        %846 = vmatprep.subr.mxu0 0.0
        %847 = vmatpush1.msra.mxu0 %v733
        %848 = vmatprep.subr.mxu0 0.0
        %849 = vmatpush1.msra.mxu0 0.0
        %850 = vmatprep.subr.mxu0 0.0
        %851 = vmatpush1.msra.mxu0 0.0
        %852 = vmatprep.subr.mxu0 0.0
        %853 = vmatpush1.msra.mxu0 0.0
        %854 = vmatprep.subr.mxu0 0.0
        %855 = vmatpush1.msra.mxu0 0.0
        %856 = vmatprep.subr.mxu0 0.0
        %857 = vmatpush1.msra.mxu0 0.0
        %858 = vmatprep.subr.mxu0 0.0
        %859 = vmatpush1.msra.mxu0 0.0
        %860 = vmatprep.subr.mxu0 0.0
        %861 = vmatpush1.msra.mxu0 0.0
        %862 = vmatprep.subr.mxu0 0.0
        %863 = vmatpush1.msra.mxu0 0.0
        %864 = vmatprep.subr.mxu0 0.0
        %865 = vmatpush1.msra.mxu0 0.0
        %866 = vmatprep.subr.mxu0 0.0
        %867 = vmatpush1.msra.mxu0 0.0
        %868 = vmatprep.subr.mxu0 0.0
        %869 = vmatpush1.msra.mxu0 0.0
        %870 = vmatprep.subr.mxu0 0.0
        %871 = vmatpush1.msra.mxu0 0.0
        %872 = vmatprep.subr.mxu0 0.0
        %873 = vmatpush1.msra.mxu0 0.0
        %874 = vmatprep.subr.mxu0 0.0
        %875 = vmatpush1.msra.mxu0 0.0
        %876 = vmatprep.subr.mxu0 0.0
        %877 = vmatpush1.msra.mxu0 0.0
        %878 = vmatprep.subr.mxu0 0.0
        %879 = vmatpush1.msra.mxu0 0.0
        %880 = vmatprep.mubr.f32.mxu0 0.0
        %881 = vmatmul.mubr.f32.gmra.mrb[0].mxu0 %v682
        %v882 = vpop.f32.mrb[0].mxu0
        %v883 = vadd.f32 %v808, %v882
        %v884 = vpop.f32.mrb[0].mxu0
        %885 = vmatprep.mubr.f32.mxu0 0.0
        %886 = vmatmul.mubr.f32.gmra.mrb[0].mxu0 %v685
        %v887 = vpop.f32.mrb[0].mxu0
        %v888 = vadd.f32 %v813, %v887
        %v889 = vpop.f32.mrb[0].mxu0
        %890 = vdwg.mxu0
        %891 = vst [vmem:[%s374] sm:$0xff] %v883
        %892 = vst [vmem:[%s374 + $0x8] sm:$0xff] %v888
        %s893 = sand.u32 %s138, 1
        %s894 = scalar_lea.sflag [#allocation6], %s893
        %s895 = sand.u32 %s138, 1
        %s896 = smul.addr %s895, 16
        %s897 = scalar_lea.vmem [#allocation7], %s896
        // Predicated region
        $region97: #{tpu_custom_call.1} parent=87 // pred_check
          %p898 = pneg %p148
        $region98: #{tpu_custom_call.1} parent=87 // pred_check_branch
          %900 = sbr.rel (%p898) target = $region100
        $region99: #{tpu_custom_call.1} parent=87 // pred_region
          %s901 = smul.u32 2, %s20
          %s902 = ssub.s32 7, %s901
          %p903 = scmp.lt.s32.totalorder %s902, 2
          %s904 = scalar_select %p903, %s902, 2
          %s905 = smul.u32 128, %s904
          %s907 = ssub.s32 256, %s905
          %908 = vsyncadd %s894, %s907
          %p909 = scmp.ne.s32.totalorder 0, %s905
          %s910 = smul.addr %s901, 128
          %s911 = scalar_lea.hbm %s5, %s910
          %s912 = smul.u32 8, %s904
          %s913 = sshll.u32 %s897, 4
          %s914 = int_to_ptr.vmem [resolvable:$true] %s913
          %s915 = sshll.u32 %s912, 4
          %919 = dma.vmem_to_hbm [thread:$0]  (%p909), %s914, %s915, %s911, %s894, 128, 128, 8
        $region100: #{tpu_custom_call.1} parent=87 // pred_fallthru
          _
      $region88: #{tpu_custom_call.1} parent=5 // pred_fallthru
        _
      %p920 = scmp.le.s32.totalorder 2, %s15
      // Predicated region
      $region101: #{tpu_custom_call.1} parent=5 // pred_check
        %p921 = pneg %p920
      $region102: #{tpu_custom_call.1} parent=5 // pred_check_branch
        %923 = sbr.rel (%p921) target = $region104
      $region103: #{tpu_custom_call.1} parent=5 // pred_region
        %s924 = ssub.s32 %s15, 2
        // Predicated region
        $region105: #{tpu_custom_call.1} parent=103 // pred_check
          %p925 = pneg %p154
        $region106: #{tpu_custom_call.1} parent=103 // pred_check_branch
          %927 = sbr.rel (%p925) target = $region108
        $region107: #{tpu_custom_call.1} parent=103 // pred_region
          %s928 = sand.u32 %s139, 1
          %s929 = scalar_lea.sflag [#allocation6], %s928
          %s930 = sand.u32 %s139, 1
          %s931 = smul.addr %s930, 16
          %s932 = scalar_lea.vmem [#allocation7], %s931
          %933 = dma.done %s929, 256
        $region108: #{tpu_custom_call.1} parent=103 // pred_fallthru
          _
      $region104: #{tpu_custom_call.1} parent=5 // pred_fallthru
        _
    $region6: #{tpu_custom_call.1} parent=1 // loop_footer
      %s19 = sadd.s32 1, %s15
    $region7: #{tpu_custom_call.1} parent=1 // loop_footer_branch
      %14 = sbr.rel target = $region3
    $region8: #{tpu_custom_call.1} parent=1 // loop_exit
      _
    %934 = vsyncpa [#allocation5], 1
    %s935 = scalar_lea.sflag [#allocation5], 1
    %936 = vsyncpa %s935, 1
    %937 = vsyncpa [#allocation6], 1
    %s938 = scalar_lea.sflag [#allocation6], 1
    %939 = vsyncpa %s938, 1

// kernel: tpu_custom_call.1
$region0: #{tpu_custom_call.1}
  #allocation0 [shape = 'u32[]', space=smem, size = 0x4, offset = 0x4, fixed_abs, tag = 'smem constant byte address 0x4 - core index']
  #allocation1 [shape = 'u32[144,128]{1,0:T(1,128)}', space=vmem, size = 0x12000, scoped, tag = 'internal scratch']
  #allocation2 [shape = 'f32[16,384]{1,0:T(8,128)}', space=vmem, size = 0x6000, scoped, tag = 'scratch operand']
  %s0 = inlined_call_operand.vmem [shape: f32[3,50,16], index: 0, kind: input, shape index: {}]
  %s1 = inlined_call_operand.vmem [shape: f32[3,16,128], index: 1, kind: input, shape index: {}]
  %s2 = inlined_call_operand.vmem [shape: f32[3,1,128], index: 2, kind: input, shape index: {}]
  %s3 = inlined_call_operand.hbm [shape: f32[384,128], index: 3, kind: input, shape index: {}]
  %s4 = inlined_call_operand.vmem [shape: f32[1,128], index: 4, kind: input, shape index: {}]
  %s5 = inlined_call_operand.hbm [shape: f32[50,128], index: 5, kind: output, shape index: {}]
  %s6 = sld [smem:[#allocation0]]
  $region109: #{tpu_custom_call.1} parent=0
    _
  %s8 = ssub.s32 1, %s6
  %s9 = scalar_select 0, %s8, %s6
  $region1: #{tpu_custom_call.1} parent=0
    #allocation3 [shape = 'u8[49152]{0}', space=vmem, size = 0xc000, scoped, tag = 'input window, operand 0']
    #allocation4 [shape = 'u8[196608]{0}', space=vmem, size = 0x30000, scoped, tag = 'input window, operand 3, single buffered']
    #allocation5 [shape = 's32[2]{0}', space=sflag, size = 0x8, scoped, tag = 'scoped memory for tpu_custom_call.1']
    #allocation6 [shape = 's32[2]{0}', space=sflag, size = 0x8, scoped, tag = 'scoped memory for tpu_custom_call.1']
    #allocation7 [shape = 'u8[16384]{0}', space=vmem, size = 0x4000, scoped, tag = 'output window, operand 0']
    %10 = vsyncpa [#allocation5], 0
    %11 = vsyncpa [#allocation6], 0
    %s12 = scalar_lea.sflag [#allocation6], 1
    %13 = vsyncpa %s12, 0
    loop: start=0, step=1, limit=6
    $region2: #{tpu_custom_call.1} parent=1 // loop_pre_header
      _
    $region3: #{tpu_custom_call.1} parent=1 // loop_header
      %s15 = sphi 0, %s19
      %p16 = scmp.ge.s32.totalorder %s15, 6
      %s25 = sphi 0, %s27
      %s28 = sphi 0, %s25
      %s29 = sphi 0, %s28
      %s45 = sphi 0, %s29
      %s49 = sphi 0, %s49
      %s51 = sphi 0, %s49
      %s52 = sphi 0, %s51
      %s66 = sphi 0, %s52
      %s70 = sphi 0, %s70
      %s72 = sphi 0, %s70
      %s73 = sphi 0, %s72
      %s87 = sphi 0, %s73
      %s91 = sphi 0, %s91
      %s93 = sphi 0, %s91
      %s94 = sphi 0, %s93
      %s108 = sphi 0, %s94
      %s112 = sphi 0, %s112
      %s114 = sphi 0, %s112
      %s115 = sphi 0, %s114
      %s129 = sphi 0, %s115
      %s135 = sphi 0, %s137
      %s138 = sphi 0, %s135
      %s139 = sphi 0, %s138
      %s155 = sphi 0, %s139
    $region4: #{tpu_custom_call.1} parent=1 // loop_header_branch
      %18 = sbr.rel (%p16) target = $region8
    $region5: #{tpu_custom_call.1} parent=1 // loop_body
      %s20 = ssub.s32 %s15, 1
      %s21 = ssub.s32 %s15, 2
      %s22 = sadd.s32 %s15, 1
      %s23 = ssub.s32 %s15, %s22
      %p24 = scmp.eq.s32.totalorder %s23, 0
      %s26 = sadd.s32 %s25, 1
      %s27 = scalar_select %p24, %s25, %s26
      %p30 = pneg %p24
      %p31 = scmp.eq.s32.totalorder %s15, 3
      %p32 = por %p30, %p31
      %p33 = scmp.ne.s32.totalorder %s25, %s28
      %p34 = scmp.eq.s32.totalorder %s15, 0
      %p35 = por %p33, %p34
      %p36 = scmp.ne.s32.totalorder %s25, %s28
      %p37 = scmp.eq.s32.totalorder %s20, 3
      %p38 = por %p36, %p37
      %p39 = scmp.ne.s32.totalorder %s28, %s29
      %p40 = scmp.eq.s32.totalorder %s20, 0
      %p41 = por %p39, %p40
      %p42 = scmp.ne.s32.totalorder %s28, %s29
      %p43 = scmp.eq.s32.totalorder %s21, 3
      %p44 = por %p42, %p43
      %p46 = scmp.ne.s32.totalorder %s29, %s45
      %p47 = scmp.eq.s32.totalorder %s21, 0
      %p48 = por %p46, %p47
      %s50 = sadd.s32 %s49, 1
      %p53 = scmp.eq.s32.totalorder %s15, 3
      %p54 = scmp.ne.s32.totalorder %s49, %s51
      %p55 = scmp.eq.s32.totalorder %s15, 0
      %p56 = por %p54, %p55
      %p57 = scmp.ne.s32.totalorder %s49, %s51
      %p58 = scmp.eq.s32.totalorder %s20, 3
      %p59 = por %p57, %p58
      %p60 = scmp.ne.s32.totalorder %s51, %s52
      %p61 = scmp.eq.s32.totalorder %s20, 0
      %p62 = por %p60, %p61
      %p63 = scmp.ne.s32.totalorder %s51, %s52
      %p64 = scmp.eq.s32.totalorder %s21, 3
      %p65 = por %p63, %p64
      %p67 = scmp.ne.s32.totalorder %s52, %s66
      %p68 = scmp.eq.s32.totalorder %s21, 0
      %p69 = por %p67, %p68
      %s71 = sadd.s32 %s70, 1
      %p74 = scmp.eq.s32.totalorder %s15, 3
      %p75 = scmp.ne.s32.totalorder %s70, %s72
      %p76 = scmp.eq.s32.totalorder %s15, 0
      %p77 = por %p75, %p76
      %p78 = scmp.ne.s32.totalorder %s70, %s72
      %p79 = scmp.eq.s32.totalorder %s20, 3
      %p80 = por %p78, %p79
      %p81 = scmp.ne.s32.totalorder %s72, %s73
      %p82 = scmp.eq.s32.totalorder %s20, 0
      %p83 = por %p81, %p82
      %p84 = scmp.ne.s32.totalorder %s72, %s73
      %p85 = scmp.eq.s32.totalorder %s21, 3
      %p86 = por %p84, %p85
      %p88 = scmp.ne.s32.totalorder %s73, %s87
      %p89 = scmp.eq.s32.totalorder %s21, 0
      %p90 = por %p88, %p89
      %s92 = sadd.s32 %s91, 1
      %p95 = scmp.eq.s32.totalorder %s15, 3
      %p96 = scmp.ne.s32.totalorder %s91, %s93
      %p97 = scmp.eq.s32.totalorder %s15, 0
      %p98 = por %p96, %p97
      %p99 = scmp.ne.s32.totalorder %s91, %s93
      %p100 = scmp.eq.s32.totalorder %s20, 3
      %p101 = por %p99, %p100
      %p102 = scmp.ne.s32.totalorder %s93, %s94
      %p103 = scmp.eq.s32.totalorder %s20, 0
      %p104 = por %p102, %p103
      %p105 = scmp.ne.s32.totalorder %s93, %s94
      %p106 = scmp.eq.s32.totalorder %s21, 3
      %p107 = por %p105, %p106
      %p109 = scmp.ne.s32.totalorder %s94, %s108
      %p110 = scmp.eq.s32.totalorder %s21, 0
      %p111 = por %p109, %p110
      %s113 = sadd.s32 %s112, 1
      %p116 = scmp.eq.s32.totalorder %s15, 3
      %p117 = scmp.ne.s32.totalorder %s112, %s114
      %p118 = scmp.eq.s32.totalorder %s15, 0
      %p119 = por %p117, %p118
      %p120 = scmp.ne.s32.totalorder %s112, %s114
      %p121 = scmp.eq.s32.totalorder %s20, 3
      %p122 = por %p120, %p121
      %p123 = scmp.ne.s32.totalorder %s114, %s115
      %p124 = scmp.eq.s32.totalorder %s20, 0
      %p125 = por %p123, %p124
      %p126 = scmp.ne.s32.totalorder %s114, %s115
      %p127 = scmp.eq.s32.totalorder %s21, 3
      %p128 = por %p126, %p127
      %p130 = scmp.ne.s32.totalorder %s115, %s129
      %p131 = scmp.eq.s32.totalorder %s21, 0
      %p132 = por %p130, %p131
      %s133 = ssub.s32 %s15, %s22
      %p134 = scmp.eq.s32.totalorder %s133, 0
      %s136 = sadd.s32 %s135, 1
      %s137 = scalar_select %p134, %s135, %s136
      %p140 = pneg %p134
      %p141 = scmp.eq.s32.totalorder %s15, 3
      %p142 = por %p140, %p141
      %p143 = scmp.ne.s32.totalorder %s135, %s138
      %p144 = scmp.eq.s32.totalorder %s15, 0
      %p145 = por %p143, %p144
      %p146 = scmp.ne.s32.totalorder %s135, %s138
      %p147 = scmp.eq.s32.totalorder %s20, 3
      %p148 = por %p146, %p147
      %p149 = scmp.ne.s32.totalorder %s138, %s139
      %p150 = scmp.eq.s32.totalorder %s20, 0
      %p151 = por %p149, %p150
      %p152 = scmp.ne.s32.totalorder %s138, %s139
      %p153 = scmp.eq.s32.totalorder %s21, 3
      %p154 = por %p152, %p153
      %p156 = scmp.ne.s32.totalorder %s139, %s155
      %p157 = scmp.eq.s32.totalorder %s21, 0
      %p158 = por %p156, %p157
      %p159 = scmp.le.s32.totalorder 1, %s15
      %p160 = scmp.lt.s32.totalorder %s15, 5
      %p161 = pnand %p159, %p160
      %p162 = pneg %p161
      // Predicated region
      $region9: #{tpu_custom_call.1} parent=5 // pred_check
        _
      $region10: #{tpu_custom_call.1} parent=5 // pred_check_branch
        %164 = sbr.rel (%p161) target = $region12
      $region11: #{tpu_custom_call.1} parent=5 // pred_region
        %s165 = ssub.s32 %s15, 1
        // Predicated region
        $region13: #{tpu_custom_call.1} parent=11 // pred_check
          %p166 = pneg %p62
        $region14: #{tpu_custom_call.1} parent=11 // pred_check_branch
          %168 = sbr.rel (%p166) target = $region16
        $region15: #{tpu_custom_call.1} parent=11 // pred_region
          _
        $region16: #{tpu_custom_call.1} parent=11 // pred_fallthru
          _
        // Predicated region
        $region17: #{tpu_custom_call.1} parent=11 // pred_check
          %p169 = pneg %p83
        $region18: #{tpu_custom_call.1} parent=11 // pred_check_branch
          %171 = sbr.rel (%p169) target = $region20
        $region19: #{tpu_custom_call.1} parent=11 // pred_region
          _
        $region20: #{tpu_custom_call.1} parent=11 // pred_fallthru
          _
        // Predicated region
        $region21: #{tpu_custom_call.1} parent=11 // pred_check
          %p172 = pneg %p104
        $region22: #{tpu_custom_call.1} parent=11 // pred_check_branch
          %174 = sbr.rel (%p172) target = $region24
        $region23: #{tpu_custom_call.1} parent=11 // pred_region
          %s176 = ssub.s32 6144, 6144
          %177 = vsyncadd [#allocation5], %s176
          %s178 = sshll.u32 [#allocation4], 4
          %s179 = int_to_ptr.vmem [resolvable:$true] %s178
          %184 = dma.hbm_to_vmem [thread:$0]  %s3, 6144, %s179, [#allocation5], 128, 128, 8
        $region24: #{tpu_custom_call.1} parent=11 // pred_fallthru
          _
        // Predicated region
        $region25: #{tpu_custom_call.1} parent=11 // pred_check
          %p185 = pneg %p125
        $region26: #{tpu_custom_call.1} parent=11 // pred_check_branch
          %187 = sbr.rel (%p185) target = $region28
        $region27: #{tpu_custom_call.1} parent=11 // pred_region
          _
        $region28: #{tpu_custom_call.1} parent=11 // pred_fallthru
          _
      $region12: #{tpu_custom_call.1} parent=5 // pred_fallthru
        _
      %p188 = scmp.lt.s32.totalorder %s15, 4
      // Predicated region
      $region29: #{tpu_custom_call.1} parent=5 // pred_check
        %p189 = pneg %p188
      $region30: #{tpu_custom_call.1} parent=5 // pred_check_branch
        %191 = sbr.rel (%p189) target = $region32
      $region31: #{tpu_custom_call.1} parent=5 // pred_region
        // Predicated region
        $region33: #{tpu_custom_call.1} parent=31 // pred_check
          %p192 = pneg %p35
        $region34: #{tpu_custom_call.1} parent=31 // pred_check_branch
          %194 = sbr.rel (%p192) target = $region36
        $region35: #{tpu_custom_call.1} parent=31 // pred_region
          %s195 = sand.u32 %s25, 1
          %s196 = sand.u32 %s25, 1
          %s197 = smul.addr %s196, 48
          %s198 = scalar_lea.vmem [#allocation3], %s197
          %s199 = smul.u32 2, %s15
          %s200 = ssub.s32 7, %s199
          %p201 = scmp.lt.s32.totalorder %s200, 2
          %s202 = scalar_select %p201, %s200, 2
          %s203 = smul.u32 384, %s202
          %p204 = scmp.ne.s32.totalorder 0, %s203
          %s205 = smul.addr %s199, 8
          %s206 = scalar_lea.vmem %s0, %s205
          // Predicated region
          $region37: #{tpu_custom_call.1} parent=35 // pred_check
            %p207 = pneg %p204
          $region38: #{tpu_custom_call.1} parent=35 // pred_check_branch
            %209 = sbr.rel (%p207) target = $region40
          $region39: #{tpu_custom_call.1} parent=35 // pred_region
            // Predicated region
            $region41: #{tpu_custom_call.1} parent=39 // pred_check
              _
            $region42: #{tpu_custom_call.1} parent=39 // pred_check_branch
              %211 = sbr.rel (0) target = $region44
            $region43: #{tpu_custom_call.1} parent=39 // pred_region
              // Predicated region
              $region63: #{tpu_custom_call.1} parent=43 // pred_check
                _
              $region64: #{tpu_custom_call.1} parent=43 // pred_check_branch
                %274 = sbr.rel (0) target = $region66
              $region65: #{tpu_custom_call.1} parent=43 // pred_region
                %s275 = sshrl.u32 %s202, 1
                // While loop
                $region67: #{tpu_custom_call.1} parent=65 // loop_pre_header
                  _
                $region68: #{tpu_custom_call.1} parent=65 // loop_header
                  %s277 = sphi 0, %s279
                  %p278 = scmp.ge.s32.totalorder %s277, %s275
                  %s282 = sphi 0, %s299
                  %s283 = sphi %s206, %s302
                  %s284 = sphi %s198, %s303
                $region69: #{tpu_custom_call.1} parent=65 // loop_header_branch
                  %281 = sbr.rel (%p278) target = $region73
                $region70: #{tpu_custom_call.1} parent=65 // loop_body
                  %v285 = vld [vmem:[%s283] sm:$0xff]
                  %286 = vst [vmem:[%s284] sm:$0xff] %v285
                  %v287 = vld [vmem:[%s283 + $0x8] sm:$0xff]
                  %288 = vst [vmem:[%s284 + $0x8] sm:$0xff] %v287
                  %v289 = vld [vmem:[%s283 + $0x38] sm:$0xff]
                  %290 = vst [vmem:[%s284 + $0x10] sm:$0xff] %v289
                  %v291 = vld [vmem:[%s283 + $0x40] sm:$0xff]
                  %292 = vst [vmem:[%s284 + $0x18] sm:$0xff] %v291
                  %v293 = vld [vmem:[%s283 + $0x70] sm:$0xff]
                  %294 = vst [vmem:[%s284 + $0x20] sm:$0xff] %v293
                  %v295 = vld [vmem:[%s283 + $0x78] sm:$0xff]
                  %296 = vst [vmem:[%s284 + $0x28] sm:$0xff] %v295
                  %s297 = sadd.s32 1, %s282
                  %p298 = scmp.ge.s32.totalorder %s297, %s275
                  %s299 = scalar_select %p298, 0, %s297
                  %s300 = smul.u32 %s299, 16
                  %s301 = smul.u32 %s299, 16
                  %s302 = scalar_lea.vmem %s206, %s300
                  %s303 = scalar_lea.vmem %s198, %s301 [#allocation3]
                $region71: #{tpu_custom_call.1} parent=65 // loop_footer
                  %s279 = sadd.s32 %s277, 1
                $region72: #{tpu_custom_call.1} parent=65 // loop_footer_branch
                  %276 = sbr.rel target = $region68
                $region73: #{tpu_custom_call.1} parent=65 // loop_exit
                  _
                %s304 = sshrl.u32 %s202, 1
                %s305 = sand.u32 %s202, 1
                %s306 = smul.u32 %s304, 2
                %s307 = smul.u32 8, %s306
                %s308 = scalar_lea.vmem %s206, %s307
                %s309 = smul.u32 8, %s306
                %s310 = scalar_lea.vmem %s198, %s309 [#allocation3]
                // While loop
                $region74: #{tpu_custom_call.1} parent=65 // loop_pre_header
                  _
                $region75: #{tpu_custom_call.1} parent=65 // loop_header
                  %s312 = sphi 0, %s314
                  %p313 = scmp.ge.s32.totalorder %s312, %s305
                  %s317 = sphi 0, %s328
                  %s318 = sphi %s308, %s331
                  %s319 = sphi %s310, %s332
                $region76: #{tpu_custom_call.1} parent=65 // loop_header_branch
                  %316 = sbr.rel (%p313) target = $region80
                $region77: #{tpu_custom_call.1} parent=65 // loop_body
                  %v320 = vld [vmem:[%s318] sm:$0xff]
                  %321 = vst [vmem:[%s319] sm:$0xff] %v320
                  %v322 = vld [vmem:[%s318 + $0x38] sm:$0xff]
                  %323 = vst [vmem:[%s319 + $0x10] sm:$0xff] %v322
                  %v324 = vld [vmem:[%s318 + $0x70] sm:$0xff]
                  %325 = vst [vmem:[%s319 + $0x20] sm:$0xff] %v324
                  %s326 = sadd.s32 1, %s317
                  %p327 = scmp.ge.s32.totalorder %s326, %s305
                  %s328 = scalar_select %p327, 0, %s326
                  %s329 = smul.u32 %s328, 8
                  %s330 = smul.u32 %s328, 8
                  %s331 = scalar_lea.vmem %s308, %s329
                  %s332 = scalar_lea.vmem %s310, %s330 [#allocation3]
                $region78: #{tpu_custom_call.1} parent=65 // loop_footer
                  %s314 = sadd.s32 %s312, 1
                $region79: #{tpu_custom_call.1} parent=65 // loop_footer_branch
                  %311 = sbr.rel target = $region75
                $region80: #{tpu_custom_call.1} parent=65 // loop_exit
                  _
              $region66: #{tpu_custom_call.1} parent=43 // pred_fallthru
                _
              // Predicated region
              $region81: #{tpu_custom_call.1} parent=43 // pred_check
                _
              $region82: #{tpu_custom_call.1} parent=43 // pred_check_branch
                %334 = sbr.rel target = $region84
              $region83: #{tpu_custom_call.1} parent=43 // pred_region
                _
              $region84: #{tpu_custom_call.1} parent=43 // pred_fallthru
                _
            $region44: #{tpu_custom_call.1} parent=39 // pred_fallthru
              _
            // Predicated region
            $region45: #{tpu_custom_call.1} parent=39 // pred_check
              _
            $region46: #{tpu_custom_call.1} parent=39 // pred_check_branch
              %213 = sbr.rel target = $region48
            $region47: #{tpu_custom_call.1} parent=39 // pred_region
              %s215 = sshrl.u32 %s202, 1
              // While loop
              $region49: #{tpu_custom_call.1} parent=47 // loop_pre_header
                _
              $region50: #{tpu_custom_call.1} parent=47 // loop_header
                %s217 = sphi 0, %s219
                %p218 = scmp.ge.s32.totalorder %s217, %s215
                %s222 = sphi 0, %s239
                %s223 = sphi %s206, %s242
                %s224 = sphi %s198, %s243
              $region51: #{tpu_custom_call.1} parent=47 // loop_header_branch
                %221 = sbr.rel (%p218) target = $region55
              $region52: #{tpu_custom_call.1} parent=47 // loop_body
                %v225 = vld [vmem:[%s223] sm:$0xff]
                %226 = vst [vmem:[%s224] sm:$0xff] %v225
                %v227 = vld [vmem:[%s223 + $0x8] sm:$0xff]
                %228 = vst [vmem:[%s224 + $0x8] sm:$0xff] %v227
                %v229 = vld [vmem:[%s223 + $0x38] sm:$0xff]
                %230 = vst [vmem:[%s224 + $0x10] sm:$0xff] %v229
                %v231 = vld [vmem:[%s223 + $0x40] sm:$0xff]
                %232 = vst [vmem:[%s224 + $0x18] sm:$0xff] %v231
                %v233 = vld [vmem:[%s223 + $0x70] sm:$0xff]
                %234 = vst [vmem:[%s224 + $0x20] sm:$0xff] %v233
                %v235 = vld [vmem:[%s223 + $0x78] sm:$0xff]
                %236 = vst [vmem:[%s224 + $0x28] sm:$0xff] %v235
                %s237 = sadd.s32 1, %s222
                %p238 = scmp.ge.s32.totalorder %s237, %s215
                %s239 = scalar_select %p238, 0, %s237
                %s240 = smul.u32 %s239, 16
                %s241 = smul.u32 %s239, 16
                %s242 = scalar_lea.vmem %s206, %s240
                %s243 = scalar_lea.vmem %s198, %s241 [#allocation3]
              $region53: #{tpu_custom_call.1} parent=47 // loop_footer
                %s219 = sadd.s32 %s217, 1
              $region54: #{tpu_custom_call.1} parent=47 // loop_footer_branch
                %216 = sbr.rel target = $region50
              $region55: #{tpu_custom_call.1} parent=47 // loop_exit
                _
              %s244 = sshrl.u32 %s202, 1
              %s245 = sand.u32 %s202, 1
              %s246 = smul.u32 %s244, 2
              %s247 = smul.u32 8, %s246
              %s248 = scalar_lea.vmem %s206, %s247
              %s249 = smul.u32 8, %s246
              %s250 = scalar_lea.vmem %s198, %s249 [#allocation3]
              // While loop
              $region56: #{tpu_custom_call.1} parent=47 // loop_pre_header
                _
              $region57: #{tpu_custom_call.1} parent=47 // loop_header
                %s252 = sphi 0, %s254
                %p253 = scmp.ge.s32.totalorder %s252, %s245
                %s257 = sphi 0, %s268
                %s258 = sphi %s248, %s271
                %s259 = sphi %s250, %s272
              $region58: #{tpu_custom_call.1} parent=47 // loop_header_branch
                %256 = sbr.rel (%p253) target = $region62
              $region59: #{tpu_custom_call.1} parent=47 // loop_body
                %v260 = vld [vmem:[%s258] sm:$0xff]
                %261 = vst [vmem:[%s259] sm:$0xff] %v260
                %v262 = vld [vmem:[%s258 + $0x38] sm:$0xff]
                %263 = vst [vmem:[%s259 + $0x10] sm:$0xff] %v262
                %v264 = vld [vmem:[%s258 + $0x70] sm:$0xff]
                %265 = vst [vmem:[%s259 + $0x20] sm:$0xff] %v264
                %s266 = sadd.s32 1, %s257
                %p267 = scmp.ge.s32.totalorder %s266, %s245
                %s268 = scalar_select %p267, 0, %s266
                %s269 = smul.u32 %s268, 8
                %s270 = smul.u32 %s268, 8
                %s271 = scalar_lea.vmem %s248, %s269
                %s272 = scalar_lea.vmem %s250, %s270 [#allocation3]
              $region60: #{tpu_custom_call.1} parent=47 // loop_footer
                %s254 = sadd.s32 %s252, 1
              $region61: #{tpu_custom_call.1} parent=47 // loop_footer_branch
                %251 = sbr.rel target = $region57
              $region62: #{tpu_custom_call.1} parent=47 // loop_exit
                _
            $region48: #{tpu_custom_call.1} parent=39 // pred_fallthru
              _
          $region40: #{tpu_custom_call.1} parent=35 // pred_fallthru
            _
          %335 = vnop
        $region36: #{tpu_custom_call.1} parent=31 // pred_fallthru
          _
      $region32: #{tpu_custom_call.1} parent=5 // pred_fallthru
        _
      %p336 = scmp.le.s32.totalorder 1, %s15
      %p337 = scmp.lt.s32.totalorder %s15, 5
      %p338 = pnand %p336, %p337
      %p339 = pneg %p338
      // Predicated region
      $region85: #{tpu_custom_call.1} parent=5 // pred_check
        _
      $region86: #{tpu_custom_call.1} parent=5 // pred_check_branch
        %341 = sbr.rel (%p338) target = $region88
      $region87: #{tpu_custom_call.1} parent=5 // pred_region
        %s342 = ssub.s32 %s15, 1
        %s343 = sand.u32 %s28, 1
        %s344 = sand.u32 %s28, 1
        %s345 = smul.addr %s344, 48
        %s346 = scalar_lea.vmem [#allocation3], %s345
        // Predicated region
        $region89: #{tpu_custom_call.1} parent=87 // pred_check
          %p347 = pneg %p41
        $region90: #{tpu_custom_call.1} parent=87 // pred_check_branch
          %349 = sbr.rel (%p347) target = $region92
        $region91: #{tpu_custom_call.1} parent=87 // pred_region
          _
        $region92: #{tpu_custom_call.1} parent=87 // pred_fallthru
          _
        // Predicated region
        $region93: #{tpu_custom_call.1} parent=87 // pred_check
          %p350 = pneg %p104
        $region94: #{tpu_custom_call.1} parent=87 // pred_check_branch
          %352 = sbr.rel (%p350) target = $region96
        $region95: #{tpu_custom_call.1} parent=87 // pred_region
          %353 = dma.done [#allocation5], 6144
        $region96: #{tpu_custom_call.1} parent=87 // pred_fallthru
          _
        %s354 = sand.u32 %s28, 1
        %s355 = sand.u32 %s28, 1
        %s356 = smul.addr %s355, 48
        %s357 = scalar_lea.vmem [#allocation3], %s356
        %p358 = pneg %p41
        %p359 = pneg %p38
        %p360 = pneg %p62
        %p361 = pneg %p59
        %p362 = pneg %p83
        %p363 = pneg %p80
        %p364 = pneg %p104
        %p365 = pneg %p101
        %p366 = pneg %p125
        %p367 = pneg %p122
        %p368 = pneg %p151
        %p369 = pneg %p148
        %s370 = sand.u32 %s138, 1
        %s371 = scalar_lea.sflag [#allocation6], %s370
        %s372 = sand.u32 %s138, 1
        %s373 = smul.addr %s372, 16
        %s374 = scalar_lea.vmem [#allocation7], %s373
        %s375 = smul.u32 2, %s20
        %s376 = ssub.s32 7, %s375
        %p377 = scmp.lt.s32.totalorder %s376, 2
        %s378 = scalar_select %p377, %s376, 2
        %s379 = smul.u32 384, %s378
        %s380 = smul.u32 2, %s20
        %s381 = ssub.s32 7, %s380
        %p382 = scmp.lt.s32.totalorder %s381, 2
        %s383 = scalar_select %p382, %s381, 2
        %s384 = smul.u32 128, %s383
        %v385 = vld [vmem:[%s346] sm:$0xff]
        %v386 = vld [vmem:[%s346 + $0x8] sm:$0xff]
        %v387 = vld [vmem:[%s1] sm:$0xff]
        %v388 = vld [vmem:[%s1 + $0x8] sm:$0xff]
        %v389 = vld [vmem:[%s2] sm:$0x1]
        %v391 = vlaneseq
        %v392 = vshrl.u32 %v391, 7
        %v393 = vsub.s32 0, %v392
        %v394 = vrot.slane %v389, %v393
        %vm396 = vcmask 130048
        %v398 = vsel %vm396, %v385, 0
        %v401 = vsel %vm396, %v386, 0
        %403 = vmatprep.subr.mxu0 0.0
        %404 = vmatpush1.msra.mxu0 %v387
        %405 = vmatprep.subr.mxu0 0.0
        %406 = vmatpush1.msra.mxu0 %v388
        %407 = vmatprep.subr.mxu0 0.0
        %408 = vmatpush1.msra.mxu0 0.0
        %409 = vmatprep.subr.mxu0 0.0
        %410 = vmatpush1.msra.mxu0 0.0
        %411 = vmatprep.subr.mxu0 0.0
        %412 = vmatpush1.msra.mxu0 0.0
        %413 = vmatprep.subr.mxu0 0.0
        %414 = vmatpush1.msra.mxu0 0.0
        %415 = vmatprep.subr.mxu0 0.0
        %416 = vmatpush1.msra.mxu0 0.0
        %417 = vmatprep.subr.mxu0 0.0
        %418 = vmatpush1.msra.mxu0 0.0
        %419 = vmatprep.subr.mxu0 0.0
        %420 = vmatpush1.msra.mxu0 0.0
        %421 = vmatprep.subr.mxu0 0.0
        %422 = vmatpush1.msra.mxu0 0.0
        %423 = vmatprep.subr.mxu0 0.0
        %424 = vmatpush1.msra.mxu0 0.0
        %425 = vmatprep.subr.mxu0 0.0
        %426 = vmatpush1.msra.mxu0 0.0
        %427 = vmatprep.subr.mxu0 0.0
        %428 = vmatpush1.msra.mxu0 0.0
        %429 = vmatprep.subr.mxu0 0.0
        %430 = vmatpush1.msra.mxu0 0.0
        %431 = vmatprep.subr.mxu0 0.0
        %432 = vmatpush1.msra.mxu0 0.0
        %433 = vmatprep.subr.mxu0 0.0
        %434 = vmatpush1.msra.mxu0 0.0
        %435 = vmatprep.subr.mxu0 0.0
        %436 = vmatpush1.msra.mxu0 0.0
        %437 = vmatprep.subr.mxu0 0.0
        %438 = vmatpush1.msra.mxu0 0.0
        %439 = vmatprep.subr.mxu0 0.0
        %440 = vmatpush1.msra.mxu0 0.0
        %441 = vmatprep.subr.mxu0 0.0
        %442 = vmatpush1.msra.mxu0 0.0
        %443 = vmatprep.subr.mxu0 0.0
        %444 = vmatpush1.msra.mxu0 0.0
        %445 = vmatprep.subr.mxu0 0.0
        %446 = vmatpush1.msra.mxu0 0.0
        %447 = vmatprep.subr.mxu0 0.0
        %448 = vmatpush1.msra.mxu0 0.0
        %449 = vmatprep.subr.mxu0 0.0
        %450 = vmatpush1.msra.mxu0 0.0
        %451 = vmatprep.subr.mxu0 0.0
        %452 = vmatpush1.msra.mxu0 0.0
        %453 = vmatprep.subr.mxu0 0.0
        %454 = vmatpush1.msra.mxu0 0.0
        %455 = vmatprep.subr.mxu0 0.0
        %456 = vmatpush1.msra.mxu0 0.0
        %457 = vmatprep.subr.mxu0 0.0
        %458 = vmatpush1.msra.mxu0 0.0
        %459 = vmatprep.subr.mxu0 0.0
        %460 = vmatpush1.msra.mxu0 0.0
        %461 = vmatprep.subr.mxu0 0.0
        %462 = vmatpush1.msra.mxu0 0.0
        %463 = vmatprep.subr.mxu0 0.0
        %464 = vmatpush1.msra.mxu0 0.0
        %465 = vmatprep.subr.mxu0 0.0
        %466 = vmatpush1.msra.mxu0 0.0
        %467 = vmatprep.mubr.f32.mxu0 0.0
        %468 = vmatmul.mubr.f32.gmra.mrb[0].mxu0 %v398
        %v469 = vpop.f32.mrb[0].mxu0
        %v470 = vadd.f32 %v394, %v469
        %v471 = vpop.f32.mrb[0].mxu0
        %472 = vmatprep.mubr.f32.mxu0 0.0
        %473 = vmatmul.mubr.f32.gmra.mrb[0].mxu0 %v401
        %v474 = vpop.f32.mrb[0].mxu0
        %v475 = vadd.f32 %v394, %v474
        %v476 = vpop.f32.mrb[0].mxu0
        %477 = vdwg.mxu0
        %v478 = vmax.f32 %v470, 0.0
        %v479 = vmax.f32 %v475, 0.0
        %480 = vst [vmem:[#allocation2] sm:$0xff] %v478
        %481 = vst [vmem:[#allocation2 + $0x18] sm:$0xff] %v479
        %s482 = scalar_lea.vmem %s346, 16 [#allocation3]
        %v483 = vld [vmem:[%s482] sm:$0xff]
        %v484 = vld [vmem:[%s482 + $0x8] sm:$0xff]
        %s485 = scalar_lea.vmem %s1, 16
        %v486 = vld [vmem:[%s485] sm:$0xff]
        %v487 = vld [vmem:[%s485 + $0x8] sm:$0xff]
        %s488 = scalar_lea.vmem %s2, 1
        %v489 = vld [vmem:[%s488] sm:$0x1]
        %v491 = vlaneseq
        %v492 = vshrl.u32 %v491, 7
        %v493 = vsub.s32 0, %v492
        %v494 = vrot.slane %v489, %v493
        %v497 = vsel %vm396, %v483, 0
        %v500 = vsel %vm396, %v484, 0
        %502 = vmatprep.subr.mxu0 0.0
        %503 = vmatpush1.msra.mxu0 %v486
        %504 = vmatprep.subr.mxu0 0.0
        %505 = vmatpush1.msra.mxu0 %v487
        %506 = vmatprep.subr.mxu0 0.0
        %507 = vmatpush1.msra.mxu0 0.0
        %508 = vmatprep.subr.mxu0 0.0
        %509 = vmatpush1.msra.mxu0 0.0
        %510 = vmatprep.subr.mxu0 0.0
        %511 = vmatpush1.msra.mxu0 0.0
        %512 = vmatprep.subr.mxu0 0.0
        %513 = vmatpush1.msra.mxu0 0.0
        %514 = vmatprep.subr.mxu0 0.0
        %515 = vmatpush1.msra.mxu0 0.0
        %516 = vmatprep.subr.mxu0 0.0
        %517 = vmatpush1.msra.mxu0 0.0
        %518 = vmatprep.subr.mxu0 0.0
        %519 = vmatpush1.msra.mxu0 0.0
        %520 = vmatprep.subr.mxu0 0.0
        %521 = vmatpush1.msra.mxu0 0.0
        %522 = vmatprep.subr.mxu0 0.0
        %523 = vmatpush1.msra.mxu0 0.0
        %524 = vmatprep.subr.mxu0 0.0
        %525 = vmatpush1.msra.mxu0 0.0
        %526 = vmatprep.subr.mxu0 0.0
        %527 = vmatpush1.msra.mxu0 0.0
        %528 = vmatprep.subr.mxu0 0.0
        %529 = vmatpush1.msra.mxu0 0.0
        %530 = vmatprep.subr.mxu0 0.0
        %531 = vmatpush1.msra.mxu0 0.0
        %532 = vmatprep.subr.mxu0 0.0
        %533 = vmatpush1.msra.mxu0 0.0
        %534 = vmatprep.subr.mxu0 0.0
        %535 = vmatpush1.msra.mxu0 0.0
        %536 = vmatprep.subr.mxu0 0.0
        %537 = vmatpush1.msra.mxu0 0.0
        %538 = vmatprep.subr.mxu0 0.0
        %539 = vmatpush1.msra.mxu0 0.0
        %540 = vmatprep.subr.mxu0 0.0
        %541 = vmatpush1.msra.mxu0 0.0
        %542 = vmatprep.subr.mxu0 0.0
        %543 = vmatpush1.msra.mxu0 0.0
        %544 = vmatprep.subr.mxu0 0.0
        %545 = vmatpush1.msra.mxu0 0.0
        %546 = vmatprep.subr.mxu0 0.0
        %547 = vmatpush1.msra.mxu0 0.0
        %548 = vmatprep.subr.mxu0 0.0
        %549 = vmatpush1.msra.mxu0 0.0
        %550 = vmatprep.subr.mxu0 0.0
        %551 = vmatpush1.msra.mxu0 0.0
        %552 = vmatprep.subr.mxu0 0.0
        %553 = vmatpush1.msra.mxu0 0.0
        %554 = vmatprep.subr.mxu0 0.0
        %555 = vmatpush1.msra.mxu0 0.0
        %556 = vmatprep.subr.mxu0 0.0
        %557 = vmatpush1.msra.mxu0 0.0
        %558 = vmatprep.subr.mxu0 0.0
        %559 = vmatpush1.msra.mxu0 0.0
        %560 = vmatprep.subr.mxu0 0.0
        %561 = vmatpush1.msra.mxu0 0.0
        %562 = vmatprep.subr.mxu0 0.0
        %563 = vmatpush1.msra.mxu0 0.0
        %564 = vmatprep.subr.mxu0 0.0
        %565 = vmatpush1.msra.mxu0 0.0
        %566 = vmatprep.mubr.f32.mxu0 0.0
        %567 = vmatmul.mubr.f32.gmra.mrb[0].mxu0 %v497
        %v568 = vpop.f32.mrb[0].mxu0
        %v569 = vadd.f32 %v494, %v568
        %v570 = vpop.f32.mrb[0].mxu0
        %571 = vmatprep.mubr.f32.mxu0 0.0
        %572 = vmatmul.mubr.f32.gmra.mrb[0].mxu0 %v500
        %v573 = vpop.f32.mrb[0].mxu0
        %v574 = vadd.f32 %v494, %v573
        %v575 = vpop.f32.mrb[0].mxu0
        %576 = vdwg.mxu0
        %v577 = vmax.f32 %v569, 0.0
        %v578 = vmax.f32 %v574, 0.0
        %579 = vst [vmem:[#allocation2 + $0x8] sm:$0xff] %v577
        %580 = vst [vmem:[#allocation2 + $0x20] sm:$0xff] %v578
        %s581 = scalar_lea.vmem %s346, 32 [#allocation3]
        %v582 = vld [vmem:[%s581] sm:$0xff]
        %v583 = vld [vmem:[%s581 + $0x8] sm:$0xff]
        %s584 = scalar_lea.vmem %s1, 32
        %v585 = vld [vmem:[%s584] sm:$0xff]
        %v586 = vld [vmem:[%s584 + $0x8] sm:$0xff]
        %s587 = scalar_lea.vmem %s2, 2
        %v588 = vld [vmem:[%s587] sm:$0x1]
        %v590 = vlaneseq
        %v591 = vshrl.u32 %v590, 7
        %v592 = vsub.s32 0, %v591
        %v593 = vrot.slane %v588, %v592
        %v596 = vsel %vm396, %v582, 0
        %v599 = vsel %vm396, %v583, 0
        %601 = vmatprep.subr.mxu0 0.0
        %602 = vmatpush1.msra.mxu0 %v585
        %603 = vmatprep.subr.mxu0 0.0
        %604 = vmatpush1.msra.mxu0 %v586
        %605 = vmatprep.subr.mxu0 0.0
        %606 = vmatpush1.msra.mxu0 0.0
        %607 = vmatprep.subr.mxu0 0.0
        %608 = vmatpush1.msra.mxu0 0.0
        %609 = vmatprep.subr.mxu0 0.0
        %610 = vmatpush1.msra.mxu0 0.0
        %611 = vmatprep.subr.mxu0 0.0
        %612 = vmatpush1.msra.mxu0 0.0
        %613 = vmatprep.subr.mxu0 0.0
        %614 = vmatpush1.msra.mxu0 0.0
        %615 = vmatprep.subr.mxu0 0.0
        %616 = vmatpush1.msra.mxu0 0.0
        %617 = vmatprep.subr.mxu0 0.0
        %618 = vmatpush1.msra.mxu0 0.0
        %619 = vmatprep.subr.mxu0 0.0
        %620 = vmatpush1.msra.mxu0 0.0
        %621 = vmatprep.subr.mxu0 0.0
        %622 = vmatpush1.msra.mxu0 0.0
        %623 = vmatprep.subr.mxu0 0.0
        %624 = vmatpush1.msra.mxu0 0.0
        %625 = vmatprep.subr.mxu0 0.0
        %626 = vmatpush1.msra.mxu0 0.0
        %627 = vmatprep.subr.mxu0 0.0
        %628 = vmatpush1.msra.mxu0 0.0
        %629 = vmatprep.subr.mxu0 0.0
        %630 = vmatpush1.msra.mxu0 0.0
        %631 = vmatprep.subr.mxu0 0.0
        %632 = vmatpush1.msra.mxu0 0.0
        %633 = vmatprep.subr.mxu0 0.0
        %634 = vmatpush1.msra.mxu0 0.0
        %635 = vmatprep.subr.mxu0 0.0
        %636 = vmatpush1.msra.mxu0 0.0
        %637 = vmatprep.subr.mxu0 0.0
        %638 = vmatpush1.msra.mxu0 0.0
        %639 = vmatprep.subr.mxu0 0.0
        %640 = vmatpush1.msra.mxu0 0.0
        %641 = vmatprep.subr.mxu0 0.0
        %642 = vmatpush1.msra.mxu0 0.0
        %643 = vmatprep.subr.mxu0 0.0
        %644 = vmatpush1.msra.mxu0 0.0
        %645 = vmatprep.subr.mxu0 0.0
        %646 = vmatpush1.msra.mxu0 0.0
        %647 = vmatprep.subr.mxu0 0.0
        %648 = vmatpush1.msra.mxu0 0.0
        %649 = vmatprep.subr.mxu0 0.0
        %650 = vmatpush1.msra.mxu0 0.0
        %651 = vmatprep.subr.mxu0 0.0
        %652 = vmatpush1.msra.mxu0 0.0
        %653 = vmatprep.subr.mxu0 0.0
        %654 = vmatpush1.msra.mxu0 0.0
        %655 = vmatprep.subr.mxu0 0.0
        %656 = vmatpush1.msra.mxu0 0.0
        %657 = vmatprep.subr.mxu0 0.0
        %658 = vmatpush1.msra.mxu0 0.0
        %659 = vmatprep.subr.mxu0 0.0
        %660 = vmatpush1.msra.mxu0 0.0
        %661 = vmatprep.subr.mxu0 0.0
        %662 = vmatpush1.msra.mxu0 0.0
        %663 = vmatprep.subr.mxu0 0.0
        %664 = vmatpush1.msra.mxu0 0.0
        %665 = vmatprep.mubr.f32.mxu0 0.0
        %666 = vmatmul.mubr.f32.gmra.mrb[0].mxu0 %v596
        %v667 = vpop.f32.mrb[0].mxu0
        %v668 = vadd.f32 %v593, %v667
        %v669 = vpop.f32.mrb[0].mxu0
        %670 = vmatprep.mubr.f32.mxu0 0.0
        %671 = vmatmul.mubr.f32.gmra.mrb[0].mxu0 %v599
        %v672 = vpop.f32.mrb[0].mxu0
        %v673 = vadd.f32 %v593, %v672
        %v674 = vpop.f32.mrb[0].mxu0
        %675 = vdwg.mxu0
        %v676 = vmax.f32 %v668, 0.0
        %v677 = vmax.f32 %v673, 0.0
        %678 = vst [vmem:[#allocation2 + $0x10] sm:$0xff] %v676
        %679 = vst [vmem:[#allocation2 + $0x28] sm:$0xff] %v677
        %v680 = vld [vmem:[#allocation2] sm:$0xff]
        %v681 = vld [vmem:[#allocation2 + $0x8] sm:$0xff]
        %v682 = vld [vmem:[#allocation2 + $0x10] sm:$0xff]
        %v683 = vld [vmem:[#allocation2 + $0x18] sm:$0xff]
        %v684 = vld [vmem:[#allocation2 + $0x20] sm:$0xff]
        %v685 = vld [vmem:[#allocation2 + $0x28] sm:$0xff]
        %v686 = vld [vmem:[#allocation4] sm:$0xff]
        %v687 = vld [vmem:[#allocation4 + $0x8] sm:$0xff]
        %v688 = vld [vmem:[#allocation4 + $0x10] sm:$0xff]
        %v689 = vld [vmem:[#allocation4 + $0x18] sm:$0xff]
        %v690 = vld [vmem:[#allocation4 + $0x20] sm:$0xff]
        %v691 = vld [vmem:[#allocation4 + $0x28] sm:$0xff]
        %v692 = vld [vmem:[#allocation4 + $0x30] sm:$0xff]
        %v693 = vld [vmem:[#allocation4 + $0x38] sm:$0xff]
        %v694 = vld [vmem:[#allocation4 + $0x40] sm:$0xff]
        %v695 = vld [vmem:[#allocation4 + $0x48] sm:$0xff]
        %v696 = vld [vmem:[#allocation4 + $0x50] sm:$0xff]
        %v697 = vld [vmem:[#allocation4 + $0x58] sm:$0xff]
        %v698 = vld [vmem:[#allocation4 + $0x60] sm:$0xff]
        %v699 = vld [vmem:[#allocation4 + $0x68] sm:$0xff]
        %v700 = vld [vmem:[#allocation4 + $0x70] sm:$0xff]
        %v701 = vld [vmem:[#allocation4 + $0x78] sm:$0xff]
        %v702 = vld [vmem:[#allocation4 + $0x80] sm:$0xff]
        %v703 = vld [vmem:[#allocation4 + $0x88] sm:$0xff]
        %v704 = vld [vmem:[#allocation4 + $0x90] sm:$0xff]
        %v705 = vld [vmem:[#allocation4 + $0x98] sm:$0xff]
        %v706 = vld [vmem:[#allocation4 + $0xa0] sm:$0xff]
        %v707 = vld [vmem:[#allocation4 + $0xa8] sm:$0xff]
        %v708 = vld [vmem:[#allocation4 + $0xb0] sm:$0xff]
        %v709 = vld [vmem:[#allocation4 + $0xb8] sm:$0xff]
        %v710 = vld [vmem:[#allocation4 + $0xc0] sm:$0xff]
        %v711 = vld [vmem:[#allocation4 + $0xc8] sm:$0xff]
        %v712 = vld [vmem:[#allocation4 + $0xd0] sm:$0xff]
        %v713 = vld [vmem:[#allocation4 + $0xd8] sm:$0xff]
        %v714 = vld [vmem:[#allocation4 + $0xe0] sm:$0xff]
        %v715 = vld [vmem:[#allocation4 + $0xe8] sm:$0xff]
        %v716 = vld [vmem:[#allocation4 + $0xf0] sm:$0xff]
        %v717 = vld [vmem:[#allocation4 + $0xf8] sm:$0xff]
        %v718 = vld [vmem:[#allocation4 + $0x100] sm:$0xff]
        %v719 = vld [vmem:[#allocation4 + $0x108] sm:$0xff]
        %v720 = vld [vmem:[#allocation4 + $0x110] sm:$0xff]
        %v721 = vld [vmem:[#allocation4 + $0x118] sm:$0xff]
        %v722 = vld [vmem:[#allocation4 + $0x120] sm:$0xff]
        %v723 = vld [vmem:[#allocation4 + $0x128] sm:$0xff]
        %v724 = vld [vmem:[#allocation4 + $0x130] sm:$0xff]
        %v725 = vld [vmem:[#allocation4 + $0x138] sm:$0xff]
        %v726 = vld [vmem:[#allocation4 + $0x140] sm:$0xff]
        %v727 = vld [vmem:[#allocation4 + $0x148] sm:$0xff]
        %v728 = vld [vmem:[#allocation4 + $0x150] sm:$0xff]
        %v729 = vld [vmem:[#allocation4 + $0x158] sm:$0xff]
        %v730 = vld [vmem:[#allocation4 + $0x160] sm:$0xff]
        %v731 = vld [vmem:[#allocation4 + $0x168] sm:$0xff]
        %v732 = vld [vmem:[#allocation4 + $0x170] sm:$0xff]
        %v733 = vld [vmem:[#allocation4 + $0x178] sm:$0xff]
        %v734 = vld [vmem:[%s4] sm:$0x1]
        %v736 = vlaneseq
        %v737 = vshrl.u32 %v736, 7
        %v738 = vsub.s32 0, %v737
        %v739 = vrot.slane %v734, %v738
        %741 = vmatprep.subr.mxu0 0.0
        %742 = vmatpush1.msra.mxu0 %v686
        %743 = vmatprep.subr.mxu0 0.0
        %744 = vmatpush1.msra.mxu0 %v687
        %745 = vmatprep.subr.mxu0 0.0
        %746 = vmatpush1.msra.mxu0 %v688
        %747 = vmatprep.subr.mxu0 0.0
        %748 = vmatpush1.msra.mxu0 %v689
        %749 = vmatprep.subr.mxu0 0.0
        %750 = vmatpush1.msra.mxu0 %v690
        %751 = vmatprep.subr.mxu0 0.0
        %752 = vmatpush1.msra.mxu0 %v691
        %753 = vmatprep.subr.mxu0 0.0
        %754 = vmatpush1.msra.mxu0 %v692
        %755 = vmatprep.subr.mxu0 0.0
        %756 = vmatpush1.msra.mxu0 %v693
        %757 = vmatprep.subr.mxu0 0.0
        %758 = vmatpush1.msra.mxu0 %v694
        %759 = vmatprep.subr.mxu0 0.0
        %760 = vmatpush1.msra.mxu0 %v695
        %761 = vmatprep.subr.mxu0 0.0
        %762 = vmatpush1.msra.mxu0 %v696
        %763 = vmatprep.subr.mxu0 0.0
        %764 = vmatpush1.msra.mxu0 %v697
        %765 = vmatprep.subr.mxu0 0.0
        %766 = vmatpush1.msra.mxu0 %v698
        %767 = vmatprep.subr.mxu0 0.0
        %768 = vmatpush1.msra.mxu0 %v699
        %769 = vmatprep.subr.mxu0 0.0
        %770 = vmatpush1.msra.mxu0 %v700
        %771 = vmatprep.subr.mxu0 0.0
        %772 = vmatpush1.msra.mxu0 %v701
        %773 = vmatprep.subr.mxu0 0.0
        %774 = vmatpush1.msra.mxu0 %v702
        %775 = vmatprep.subr.mxu0 0.0
        %776 = vmatpush1.msra.mxu0 %v703
        %777 = vmatprep.subr.mxu0 0.0
        %778 = vmatpush1.msra.mxu0 %v704
        %779 = vmatprep.subr.mxu0 0.0
        %780 = vmatpush1.msra.mxu0 %v705
        %781 = vmatprep.subr.mxu0 0.0
        %782 = vmatpush1.msra.mxu0 %v706
        %783 = vmatprep.subr.mxu0 0.0
        %784 = vmatpush1.msra.mxu0 %v707
        %785 = vmatprep.subr.mxu0 0.0
        %786 = vmatpush1.msra.mxu0 %v708
        %787 = vmatprep.subr.mxu0 0.0
        %788 = vmatpush1.msra.mxu0 %v709
        %789 = vmatprep.subr.mxu0 0.0
        %790 = vmatpush1.msra.mxu0 %v710
        %791 = vmatprep.subr.mxu0 0.0
        %792 = vmatpush1.msra.mxu0 %v711
        %793 = vmatprep.subr.mxu0 0.0
        %794 = vmatpush1.msra.mxu0 %v712
        %795 = vmatprep.subr.mxu0 0.0
        %796 = vmatpush1.msra.mxu0 %v713
        %797 = vmatprep.subr.mxu0 0.0
        %798 = vmatpush1.msra.mxu0 %v714
        %799 = vmatprep.subr.mxu0 0.0
        %800 = vmatpush1.msra.mxu0 %v715
        %801 = vmatprep.subr.mxu0 0.0
        %802 = vmatpush1.msra.mxu0 %v716
        %803 = vmatprep.subr.mxu0 0.0
        %804 = vmatpush1.msra.mxu0 %v717
        %805 = vmatprep.mubr.f32.mxu0 %v681
        %806 = vmatmul.mubr.f32.gmra.mrb[0].mxu0 %v680
        %v807 = vpop.f32.mrb[0].mxu0
        %v808 = vadd.f32 %v739, %v807
        %v809 = vpop.f32.mrb[0].mxu0
        %810 = vmatprep.mubr.f32.mxu0 %v684
        %811 = vmatmul.mubr.f32.gmra.mrb[0].mxu0 %v683
        %v812 = vpop.f32.mrb[0].mxu0
        %v813 = vadd.f32 %v739, %v812
        %v814 = vpop.f32.mrb[0].mxu0
        %815 = vdwg.mxu0
        %816 = vmatprep.subr.mxu0 0.0
        %817 = vmatpush1.msra.mxu0 %v718
        %818 = vmatprep.subr.mxu0 0.0
        %819 = vmatpush1.msra.mxu0 %v719
        %820 = vmatprep.subr.mxu0 0.0
        %821 = vmatpush1.msra.mxu0 %v720
        %822 = vmatprep.subr.mxu0 0.0
        %823 = vmatpush1.msra.mxu0 %v721
        %824 = vmatprep.subr.mxu0 0.0
        %825 = vmatpush1.msra.mxu0 %v722
        %826 = vmatprep.subr.mxu0 0.0
        %827 = vmatpush1.msra.mxu0 %v723
        %828 = vmatprep.subr.mxu0 0.0
        %829 = vmatpush1.msra.mxu0 %v724
        %830 = vmatprep.subr.mxu0 0.0
        %831 = vmatpush1.msra.mxu0 %v725
        %832 = vmatprep.subr.mxu0 0.0
        %833 = vmatpush1.msra.mxu0 %v726
        %834 = vmatprep.subr.mxu0 0.0
        %835 = vmatpush1.msra.mxu0 %v727
        %836 = vmatprep.subr.mxu0 0.0
        %837 = vmatpush1.msra.mxu0 %v728
        %838 = vmatprep.subr.mxu0 0.0
        %839 = vmatpush1.msra.mxu0 %v729
        %840 = vmatprep.subr.mxu0 0.0
        %841 = vmatpush1.msra.mxu0 %v730
        %842 = vmatprep.subr.mxu0 0.0
        %843 = vmatpush1.msra.mxu0 %v731
        %844 = vmatprep.subr.mxu0 0.0
        %845 = vmatpush1.msra.mxu0 %v732
        %846 = vmatprep.subr.mxu0 0.0
        %847 = vmatpush1.msra.mxu0 %v733
        %848 = vmatprep.subr.mxu0 0.0
        %849 = vmatpush1.msra.mxu0 0.0
        %850 = vmatprep.subr.mxu0 0.0
        %851 = vmatpush1.msra.mxu0 0.0
        %852 = vmatprep.subr.mxu0 0.0
        %853 = vmatpush1.msra.mxu0 0.0
        %854 = vmatprep.subr.mxu0 0.0
        %855 = vmatpush1.msra.mxu0 0.0
        %856 = vmatprep.subr.mxu0 0.0
        %857 = vmatpush1.msra.mxu0 0.0
        %858 = vmatprep.subr.mxu0 0.0
        %859 = vmatpush1.msra.mxu0 0.0
        %860 = vmatprep.subr.mxu0 0.0
        %861 = vmatpush1.msra.mxu0 0.0
        %862 = vmatprep.subr.mxu0 0.0
        %863 = vmatpush1.msra.mxu0 0.0
        %864 = vmatprep.subr.mxu0 0.0
        %865 = vmatpush1.msra.mxu0 0.0
        %866 = vmatprep.subr.mxu0 0.0
        %867 = vmatpush1.msra.mxu0 0.0
        %868 = vmatprep.subr.mxu0 0.0
        %869 = vmatpush1.msra.mxu0 0.0
        %870 = vmatprep.subr.mxu0 0.0
        %871 = vmatpush1.msra.mxu0 0.0
        %872 = vmatprep.subr.mxu0 0.0
        %873 = vmatpush1.msra.mxu0 0.0
        %874 = vmatprep.subr.mxu0 0.0
        %875 = vmatpush1.msra.mxu0 0.0
        %876 = vmatprep.subr.mxu0 0.0
        %877 = vmatpush1.msra.mxu0 0.0
        %878 = vmatprep.subr.mxu0 0.0
        %879 = vmatpush1.msra.mxu0 0.0
        %880 = vmatprep.mubr.f32.mxu0 0.0
        %881 = vmatmul.mubr.f32.gmra.mrb[0].mxu0 %v682
        %v882 = vpop.f32.mrb[0].mxu0
        %v883 = vadd.f32 %v808, %v882
        %v884 = vpop.f32.mrb[0].mxu0
        %885 = vmatprep.mubr.f32.mxu0 0.0
        %886 = vmatmul.mubr.f32.gmra.mrb[0].mxu0 %v685
        %v887 = vpop.f32.mrb[0].mxu0
        %v888 = vadd.f32 %v813, %v887
        %v889 = vpop.f32.mrb[0].mxu0
        %890 = vdwg.mxu0
        %891 = vst [vmem:[%s374] sm:$0xff] %v883
        %892 = vst [vmem:[%s374 + $0x8] sm:$0xff] %v888
        %s893 = sand.u32 %s138, 1
        %s894 = scalar_lea.sflag [#allocation6], %s893
        %s895 = sand.u32 %s138, 1
        %s896 = smul.addr %s895, 16
        %s897 = scalar_lea.vmem [#allocation7], %s896
        // Predicated region
        $region97: #{tpu_custom_call.1} parent=87 // pred_check
          %p898 = pneg %p148
        $region98: #{tpu_custom_call.1} parent=87 // pred_check_branch
          %900 = sbr.rel (%p898) target = $region100
        $region99: #{tpu_custom_call.1} parent=87 // pred_region
          %s901 = smul.u32 2, %s20
          %s902 = ssub.s32 7, %s901
          %p903 = scmp.lt.s32.totalorder %s902, 2
          %s904 = scalar_select %p903, %s902, 2
          %s905 = smul.u32 128, %s904
          %s907 = ssub.s32 256, %s905
          %908 = vsyncadd %s894, %s907
          %p909 = scmp.ne.s32.totalorder 0, %s905
          %s910 = smul.addr %s901, 128
          %s911 = scalar_lea.hbm %s5, %s910
          %s912 = smul.u32 8, %s904
          %s913 = sshll.u32 %s897, 4
          %s914 = int_to_ptr.vmem [resolvable:$true] %s913
          %s915 = sshll.u32 %s912, 4
          %919 = dma.vmem_to_hbm [thread:$0]  (%p909), %s914, %s915, %s911, %s894, 128, 128, 8
        $region100: #{tpu_custom_call.1} parent=87 // pred_fallthru
          _
      $region88: #{tpu_custom_call.1} parent=5 // pred_fallthru
        _
      %p920 = scmp.le.s32.totalorder 2, %s15
      // Predicated region
      $region101: #{tpu_custom_call.1} parent=5 // pred_check
        %p921 = pneg %p920
      $region102: #{tpu_custom_call.1} parent=5 // pred_check_branch
        %923 = sbr.rel (%p921) target = $region104
      $region103: #{tpu_custom_call.1} parent=5 // pred_region
        %s924 = ssub.s32 %s15, 2
        // Predicated region
        $region105: #{tpu_custom_call.1} parent=103 // pred_check
          %p925 = pneg %p154
        $region106: #{tpu_custom_call.1} parent=103 // pred_check_branch
          %927 = sbr.rel (%p925) target = $region108
        $region107: #{tpu_custom_call.1} parent=103 // pred_region
          %s928 = sand.u32 %s139, 1
          %s929 = scalar_lea.sflag [#allocation6], %s928
          %s930 = sand.u32 %s139, 1
          %s931 = smul.addr %s930, 16
          %s932 = scalar_lea.vmem [#allocation7], %s931
          %933 = dma.done %s929, 256
        $region108: #{tpu_custom_call.1} parent=103 // pred_fallthru
          _
      $region104: #{tpu_custom_call.1} parent=5 // pred_fallthru
        _
    $region6: #{tpu_custom_call.1} parent=1 // loop_footer
      %s19 = sadd.s32 1, %s15
    $region7: #{tpu_custom_call.1} parent=1 // loop_footer_branch
      %14 = sbr.rel target = $region3
    $region8: #{tpu_custom_call.1} parent=1 // loop_exit
      _
    %934 = vsyncpa [#allocation5], 1
    %s935 = scalar_lea.sflag [#allocation5], 1
    %936 = vsyncpa %s935, 1
    %937 = vsyncpa [#allocation6], 1
    %s938 = scalar_lea.sflag [#allocation6], 1
    %939 = vsyncpa %s938, 1

</llo_original>
